<compile_context>
chip_gen: v7x
topology: tpu7x:2x2x1
jax: 0.10.0
libtpu: 0.0.40
codegen_flags: <defaults>
</compile_context>

<pallas_src>
import math

import jax
import jax.numpy as jnp
from jax import lax
from jax.experimental import pallas as pl
from jax.experimental.pallas import tpu as pltpu


# -------------------------- rotary (xpos) tables ---------------------------
# Matches lucidrains/rotary-embedding-torch semantics for
# RotaryEmbedding(dim=head_depth, use_xpos=True).rotate_queries_and_keys:
#   cos/sin are interleave-repeated, the xpos scale is half-concatenated.

def rotary_xpos_tables(seq_len, dim, theta=10000.0, xpos_scale_base=512.0):
    inv_freq = 1.0 / (theta ** (jnp.arange(0, dim, 2, dtype=jnp.float32) / dim))
    t = jnp.arange(seq_len, dtype=jnp.float32)
    freqs = t[:, None] * inv_freq[None, :]                      # (S, dim/2)
    freqs = jnp.repeat(freqs, 2, axis=-1)                       # (S, dim) [f0,f0,f1,f1,..]
    cos, sin = jnp.cos(freqs), jnp.sin(freqs)
    base_scale = (jnp.arange(0, dim, 2, dtype=jnp.float32) + 0.4 * dim) / (1.4 * dim)
    power = (t - (seq_len // 2)) / xpos_scale_base               # (S,)
    scale_half = base_scale[None, :] ** power[:, None]           # (S, dim/2)
    scale = jnp.concatenate([scale_half, scale_half], axis=-1)   # library concatenates
    return cos, sin, scale


# ----------------------- one-time parameter preparation ---------------------
# Everything here runs once at "init" time (per performance review), never per call.

def prepare_mha_params(params, n_heads, seq_len, batch):
    E = params["Wq"].shape[0]
    D = E // n_heads
    half = D // 2
    coef = math.log(400, 50) / math.sqrt(D)

    # Library-layout rotary tables, permuted to per-head half-concat order.
    cos_il, sin_il, scale_il = rotary_xpos_tables(seq_len, D)
    perm = jnp.concatenate([jnp.arange(0, D, 2), jnp.arange(1, D, 2)])  # evens, then odds
    cos_hc, sin_hc, scale_hc = cos_il[:, perm], sin_il[:, perm], scale_il[:, perm]

    # Fold attn coefficient + xpos scale into the Q-side tables, 1/scale into the K-side
    # tables, and the rotate_half sign into the sin tables.
    sign = jnp.concatenate([-jnp.ones((half,), jnp.float32),
                            jnp.ones((half,), jnp.float32)])
    cos_q = cos_hc * scale_hc * coef
    sin_q = sin_hc * scale_hc * coef * sign
    cos_k = cos_hc / scale_hc
    sin_k = (sin_hc / scale_hc) * sign

    # Pre-tile to (B*S, E): repeat over heads along lanes and over batch along sublanes.
    tile = lambda t: jnp.tile(t, (batch, n_heads)).astype(jnp.float32)
    cq, sq, ck, sk = map(tile, (cos_q, sin_q, cos_k, sin_k))

    # Fold the interleave->half-concat permutation (and the half-swap used by
    # rotate_half) into the Wq / Wk output-feature rows, then stack everything into a
    # single (5E, E) projection weight: [Wq', Wq'_swapped, Wk', Wk'_swapped, Wv].
    heads_off = jnp.arange(n_heads)[:, None] * D
    full_perm = (heads_off + perm[None, :]).reshape(-1)
    swap = jnp.concatenate([jnp.arange(half, D), jnp.arange(0, half)])
    full_perm_sw = (heads_off + perm[swap][None, :]).reshape(-1)
    w_big = jnp.concatenate([
        params["Wq"][full_perm],
        params["Wq"][full_perm_sw],
        params["Wk"][full_perm],
        params["Wk"][full_perm_sw],
        params["Wv"],
    ], axis=0).astype(jnp.float32)                               # (5E, E)

    # Block-diagonal additive mask: forbids cross-batch attention so all batch rows can
    # share each head's logits / PV matmuls.
    bid = jnp.repeat(jnp.arange(batch), seq_len)                 # (B*S,)
    batch_mask = jnp.where(bid[:, None] == bid[None, :], 0.0, -1e30).astype(jnp.float32)

    return dict(w_big=w_big, wo=params["Wout"].astype(jnp.float32),
                cq=cq, sq=sq, ck=ck, sk=sk, batch_mask=batch_mask,
                n_heads=n_heads, seq_len=seq_len, batch=batch, embed_dim=E)


# ------------------------------ fused kernel -------------------------------

def _make_mha_kernel(n_heads, head_depth, embed_dim):
    H, D, E = n_heads, head_depth, embed_dim
    dn = (((1,), (1,)), ((), ()))   # contract last dim of lhs with last dim of rhs

    def kernel(x_ref, w_ref, wo_ref, cq_ref, sq_ref, ck_ref, sk_ref, m_ref, o_ref):
        x = x_ref[...]                                           # (BS, E), f32

        # One fused projection: [q | q_swapped | k | k_swapped | v] in a single MXU dot,
        # weights consumed in their stored (out, in) layout.
        proj = lax.dot_general(x, w_ref[...], dn,
                               preferred_element_type=jnp.float32)   # (BS, 5E)
        q    = proj[:, 0 * E:1 * E]
        q_sw = proj[:, 1 * E:2 * E]
        k    = proj[:, 2 * E:3 * E]
        k_sw = proj[:, 3 * E:4 * E]
        v    = proj[:, 4 * E:5 * E]

        # Full-width xpos rotary: tables are (BS, E); coef / scale / rotate_half sign
        # are already folded in on the host.
        q_r = q * cq_ref[...] + q_sw * sq_ref[...]
        k_r = k * ck_ref[...] + k_sw * sk_ref[...]

        neg = m_ref[...]                                         # (BS, BS) block-diag mask

        head_outs = []
        for h in range(H):                 # small static loop, unrolled at trace time
            sl = slice(h * D, (h + 1) * D)
            logits = lax.dot_general(q_r[:, sl], k_r[:, sl], dn,
                                     preferred_element_type=jnp.float32) + neg
            mmax = jnp.max(logits, axis=-1, keepdims=True)
            e = jnp.exp(logits - mmax)
            probs = e / jnp.sum(e, axis=-1, keepdims=True)
            head_outs.append(jnp.dot(probs, v[:, sl],
                                     preferred_element_type=jnp.float32))   # (BS, D)

        attn = jnp.concatenate(head_outs, axis=-1)               # (BS, E)
        o_ref[...] = lax.dot_general(attn, wo_ref[...], dn,
                                     preferred_element_type=jnp.float32)

    return kernel


# ------------------------------ module forward -----------------------------

def multi_head_attention_forward(x, prepared):
    """Encoder self-attention forward of MultiHeadAttention (the module's x=[x,x,x],
    mask=None call pattern).  All heavy host prep lives in prepare_mha_params()."""
    B, S, E = x.shape
    H = prepared["n_heads"]
    D = E // H
    BS = B * S

    x_flat = x.reshape(BS, E)          # contiguous -> free metadata reshape

    full = lambda shape: pl.BlockSpec(shape, lambda i: (0,) * len(shape))

    out = pl.pallas_call(
        _make_mha_kernel(H, D, E),
        out_shape=jax.ShapeDtypeStruct((BS, E), jnp.float32),
        grid=(1,),                      # single step: single-TC friendly (v5e/v6e)
        in_specs=[full((BS, E)),        # x
                  full((5 * E, E)),     # stacked projection weight
                  full((E, E)),         # Wout
                  full((BS, E)), full((BS, E)),   # cq, sq
                  full((BS, E)), full((BS, E)),   # ck, sk
                  full((BS, BS))],      # block-diagonal batch mask
        out_specs=full((BS, E)),
        compiler_params=pltpu.CompilerParams(
            dimension_semantics=("arbitrary",)),
    )(x_flat, prepared["w_big"], prepared["wo"],
      prepared["cq"], prepared["sq"], prepared["ck"], prepared["sk"],
      prepared["batch_mask"])

    return out.reshape(B, S, E)


# --------------------------- pure-JAX reference -----------------------------

def reference_forward(q_in, k_in, v_in, params, n_heads):
    B, S, E = q_in.shape
    D = E // n_heads
    hp = lambda x, w: jnp.einsum("bse,oe->bso", x, w, precision="highest")
    Q, K, V = hp(q_in, params["Wq"]), hp(k_in, params["Wk"]), hp(v_in, params["Wv"])
    sh = lambda t: t.reshape(B, S, n_heads, D).transpose(0, 2, 1, 3)
    Q, K, V = sh(Q), sh(K), sh(V)
    cos, sin, scale = rotary_xpos_tables(S, D)

    def rotate_half(x):
        x1, x2 = x[..., 0::2], x[..., 1::2]
        return jnp.stack((-x2, x1), axis=-1).reshape(x.shape)

    Qr = (Q * cos + rotate_half(Q) * sin) * scale
    Kr = (K * cos + rotate_half(K) * sin) * (1.0 / scale)
    coef = math.log(400, 50) / math.sqrt(D)
    logits = jnp.einsum("bhqd,bhkd->bhqk", Qr, Kr, precision="highest") * coef
    probs = jax.nn.softmax(logits, axis=-1)
    out = jnp.einsum("bhqk,bhkd->bhqd", probs, V, precision="highest")
    out = out.transpose(0, 2, 1, 3).reshape(B, S, E)
    return jnp.einsum("bse,oe->bso", out, params["Wout"], precision="highest")


if __name__ == "__main__":
    B, S, E, H = 2, 16, 32, 4          # batch, n_nodes, embed_dim, n_heads
    D = E // H                          # head_depth = 8

    key = jax.random.PRNGKey(0)
    kx, kq, kk, kv, ko = jax.random.split(key, 5)
    x = jax.random.normal(kx, (B, S, E), dtype=jnp.float32)

    # deterministic init matching init_parameters(): uniform(-stdv, stdv)
    stdv_qkv = 1.0 / math.sqrt(D)
    stdv_out = 1.0 / math.sqrt(E)
    params = {
        "Wq": jax.random.uniform(kq, (E, E), jnp.float32, -stdv_qkv, stdv_qkv),
        "Wk": jax.random.uniform(kk, (E, E), jnp.float32, -stdv_qkv, stdv_qkv),
        "Wv": jax.random.uniform(kv, (E, E), jnp.float32, -stdv_qkv, stdv_qkv),
        "Wout": jax.random.uniform(ko, (E, E), jnp.float32, -stdv_out, stdv_out),
    }

    # one-time init-side prep (stacked weights, folded rotary tables, batch mask)
    prepared = prepare_mha_params(params, H, S, B)

    # encoder-style call: x = [x, x, x], mask=None
    out = multi_head_attention_forward(x, prepared)
    out = jax.block_until_ready(out)

    ref = reference_forward(x, x, x, params, H)
    assert out.shape == (B, S, E)
    max_err = float(jnp.max(jnp.abs(out - ref)))
    assert max_err < 2e-3, f"mismatch vs reference: {max_err}"

    print("KERNEL_OK")
</pallas_src>

<mosaic_0001>
module attributes {stable_mosaic.version = 11 : i64} {
  func.func @kernel(%arg0: i32, %arg1: memref<32x32xf32, #tpu.memory_space<vmem>>, %arg2: memref<160x32xf32, #tpu.memory_space<vmem>>, %arg3: memref<32x32xf32, #tpu.memory_space<vmem>>, %arg4: memref<32x32xf32, #tpu.memory_space<vmem>>, %arg5: memref<32x32xf32, #tpu.memory_space<vmem>>, %arg6: memref<32x32xf32, #tpu.memory_space<vmem>>, %arg7: memref<32x32xf32, #tpu.memory_space<vmem>>, %arg8: memref<32x32xf32, #tpu.memory_space<vmem>>, %arg9: memref<32x32xf32, #tpu.memory_space<vmem>>) attributes {dimension_semantics = [#tpu.dimension_semantics<arbitrary>], iteration_bounds = array<i64: 1>, scalar_prefetch = 0 : i64, scratch_operands = 0 : i64, tpu.core_type = #tpu.core_type<tc>, window_params = [{pipeline_mode = #tpu.pipeline_mode<synchronous>, transform_indices = @transform_0, window_bounds = array<i64: 32, 32>}, {pipeline_mode = #tpu.pipeline_mode<synchronous>, transform_indices = @transform_1, window_bounds = array<i64: 160, 32>}, {pipeline_mode = #tpu.pipeline_mode<synchronous>, transform_indices = @transform_2, window_bounds = array<i64: 32, 32>}, {pipeline_mode = #tpu.pipeline_mode<synchronous>, transform_indices = @transform_3, window_bounds = array<i64: 32, 32>}, {pipeline_mode = #tpu.pipeline_mode<synchronous>, transform_indices = @transform_4, window_bounds = array<i64: 32, 32>}, {pipeline_mode = #tpu.pipeline_mode<synchronous>, transform_indices = @transform_5, window_bounds = array<i64: 32, 32>}, {pipeline_mode = #tpu.pipeline_mode<synchronous>, transform_indices = @transform_6, window_bounds = array<i64: 32, 32>}, {pipeline_mode = #tpu.pipeline_mode<synchronous>, transform_indices = @transform_7, window_bounds = array<i64: 32, 32>}, {pipeline_mode = #tpu.pipeline_mode<synchronous>, transform_indices = @transform_8, window_bounds = array<i64: 32, 32>}]} {
    %c0 = arith.constant 0 : index
    %c0_0 = arith.constant 0 : index
    %0 = vector.load %arg1[%c0, %c0_0] : memref<32x32xf32, #tpu.memory_space<vmem>>, vector<32x32xf32>
    %c0_1 = arith.constant 0 : index
    %c0_2 = arith.constant 0 : index
    %1 = vector.load %arg2[%c0_1, %c0_2] : memref<160x32xf32, #tpu.memory_space<vmem>>, vector<160x32xf32>
    %cst = arith.constant dense<0.000000e+00> : vector<32x160xf32>
    %2 = tpu.matmul %0, %1, %cst {dimension_numbers = #tpu.dot_dimension_numbers<[1], [1], [0], [0], [0, 0, 1, 0], [], []>} : vector<32x32xf32>, vector<160x32xf32>, vector<32x160xf32> -> vector<32x160xf32>
    %3 = vector.extract_strided_slice %2 {offsets = [0, 0], sizes = [32, 32], strides = [1, 1]} : vector<32x160xf32> to vector<32x32xf32>
    %4 = vector.extract_strided_slice %2 {offsets = [0, 32], sizes = [32, 32], strides = [1, 1]} : vector<32x160xf32> to vector<32x32xf32>
    %5 = vector.extract_strided_slice %2 {offsets = [0, 64], sizes = [32, 32], strides = [1, 1]} : vector<32x160xf32> to vector<32x32xf32>
    %6 = vector.extract_strided_slice %2 {offsets = [0, 96], sizes = [32, 32], strides = [1, 1]} : vector<32x160xf32> to vector<32x32xf32>
    %7 = vector.extract_strided_slice %2 {offsets = [0, 128], sizes = [32, 32], strides = [1, 1]} : vector<32x160xf32> to vector<32x32xf32>
    %c0_3 = arith.constant 0 : index
    %c0_4 = arith.constant 0 : index
    %8 = vector.load %arg4[%c0_3, %c0_4] : memref<32x32xf32, #tpu.memory_space<vmem>>, vector<32x32xf32>
    %9 = arith.mulf %3, %8 : vector<32x32xf32>
    %c0_5 = arith.constant 0 : index
    %c0_6 = arith.constant 0 : index
    %10 = vector.load %arg5[%c0_5, %c0_6] : memref<32x32xf32, #tpu.memory_space<vmem>>, vector<32x32xf32>
    %11 = arith.mulf %4, %10 : vector<32x32xf32>
    %12 = arith.addf %9, %11 : vector<32x32xf32>
    %c0_7 = arith.constant 0 : index
    %c0_8 = arith.constant 0 : index
    %13 = vector.load %arg6[%c0_7, %c0_8] : memref<32x32xf32, #tpu.memory_space<vmem>>, vector<32x32xf32>
    %14 = arith.mulf %5, %13 : vector<32x32xf32>
    %c0_9 = arith.constant 0 : index
    %c0_10 = arith.constant 0 : index
    %15 = vector.load %arg7[%c0_9, %c0_10] : memref<32x32xf32, #tpu.memory_space<vmem>>, vector<32x32xf32>
    %16 = arith.mulf %6, %15 : vector<32x32xf32>
    %17 = arith.addf %14, %16 : vector<32x32xf32>
    %c0_11 = arith.constant 0 : index
    %c0_12 = arith.constant 0 : index
    %18 = vector.load %arg8[%c0_11, %c0_12] : memref<32x32xf32, #tpu.memory_space<vmem>>, vector<32x32xf32>
    %19 = vector.extract_strided_slice %12 {offsets = [0, 0], sizes = [32, 8], strides = [1, 1]} : vector<32x32xf32> to vector<32x8xf32>
    %20 = vector.extract_strided_slice %17 {offsets = [0, 0], sizes = [32, 8], strides = [1, 1]} : vector<32x32xf32> to vector<32x8xf32>
    %cst_13 = arith.constant dense<0.000000e+00> : vector<32x32xf32>
    %21 = tpu.matmul %19, %20, %cst_13 {dimension_numbers = #tpu.dot_dimension_numbers<[1], [1], [0], [0], [0, 0, 1, 0], [], []>} : vector<32x8xf32>, vector<32x8xf32>, vector<32x32xf32> -> vector<32x32xf32>
    %22 = arith.addf %21, %18 : vector<32x32xf32>
    %cst_14 = arith.constant dense<0xFF800000> : vector<32xf32>
    %23 = vector.multi_reduction <maximumf>, %22, %cst_14 [1] : vector<32x32xf32> to vector<32xf32>
    %24 = vector.shape_cast %23 : vector<32xf32> to vector<32x1xf32>
    %25 = vector.broadcast %24 : vector<32x1xf32> to vector<32x32xf32>
    %26 = arith.subf %22, %25 : vector<32x32xf32>
    %27 = math.exp %26 : vector<32x32xf32>
    %cst_15 = arith.constant dense<0.000000e+00> : vector<32xf32>
    %28 = vector.multi_reduction <add>, %27, %cst_15 [1] : vector<32x32xf32> to vector<32xf32>
    %29 = vector.shape_cast %28 : vector<32xf32> to vector<32x1xf32>
    %30 = vector.broadcast %29 : vector<32x1xf32> to vector<32x32xf32>
    %31 = arith.divf %27, %30 : vector<32x32xf32>
    %32 = vector.extract_strided_slice %7 {offsets = [0, 0], sizes = [32, 8], strides = [1, 1]} : vector<32x32xf32> to vector<32x8xf32>
    %cst_16 = arith.constant dense<0.000000e+00> : vector<32x8xf32>
    %33 = tpu.matmul %31, %32, %cst_16 {dimension_numbers = #tpu.dot_dimension_numbers<[1], [0], [0], [1], [0, 0, 1, 1], [], []>} : vector<32x32xf32>, vector<32x8xf32>, vector<32x8xf32> -> vector<32x8xf32>
    %34 = vector.extract_strided_slice %12 {offsets = [0, 8], sizes = [32, 8], strides = [1, 1]} : vector<32x32xf32> to vector<32x8xf32>
    %35 = vector.extract_strided_slice %17 {offsets = [0, 8], sizes = [32, 8], strides = [1, 1]} : vector<32x32xf32> to vector<32x8xf32>
    %cst_17 = arith.constant dense<0.000000e+00> : vector<32x32xf32>
    %36 = tpu.matmul %34, %35, %cst_17 {dimension_numbers = #tpu.dot_dimension_numbers<[1], [1], [0], [0], [0, 0, 1, 0], [], []>} : vector<32x8xf32>, vector<32x8xf32>, vector<32x32xf32> -> vector<32x32xf32>
    %37 = arith.addf %36, %18 : vector<32x32xf32>
    %cst_18 = arith.constant dense<0xFF800000> : vector<32xf32>
    %38 = vector.multi_reduction <maximumf>, %37, %cst_18 [1] : vector<32x32xf32> to vector<32xf32>
    %39 = vector.shape_cast %38 : vector<32xf32> to vector<32x1xf32>
    %40 = vector.broadcast %39 : vector<32x1xf32> to vector<32x32xf32>
    %41 = arith.subf %37, %40 : vector<32x32xf32>
    %42 = math.exp %41 : vector<32x32xf32>
    %cst_19 = arith.constant dense<0.000000e+00> : vector<32xf32>
    %43 = vector.multi_reduction <add>, %42, %cst_19 [1] : vector<32x32xf32> to vector<32xf32>
    %44 = vector.shape_cast %43 : vector<32xf32> to vector<32x1xf32>
    %45 = vector.broadcast %44 : vector<32x1xf32> to vector<32x32xf32>
    %46 = arith.divf %42, %45 : vector<32x32xf32>
    %47 = vector.extract_strided_slice %7 {offsets = [0, 8], sizes = [32, 8], strides = [1, 1]} : vector<32x32xf32> to vector<32x8xf32>
    %cst_20 = arith.constant dense<0.000000e+00> : vector<32x8xf32>
    %48 = tpu.matmul %46, %47, %cst_20 {dimension_numbers = #tpu.dot_dimension_numbers<[1], [0], [0], [1], [0, 0, 1, 1], [], []>} : vector<32x32xf32>, vector<32x8xf32>, vector<32x8xf32> -> vector<32x8xf32>
    %49 = vector.extract_strided_slice %12 {offsets = [0, 16], sizes = [32, 8], strides = [1, 1]} : vector<32x32xf32> to vector<32x8xf32>
    %50 = vector.extract_strided_slice %17 {offsets = [0, 16], sizes = [32, 8], strides = [1, 1]} : vector<32x32xf32> to vector<32x8xf32>
    %cst_21 = arith.constant dense<0.000000e+00> : vector<32x32xf32>
    %51 = tpu.matmul %49, %50, %cst_21 {dimension_numbers = #tpu.dot_dimension_numbers<[1], [1], [0], [0], [0, 0, 1, 0], [], []>} : vector<32x8xf32>, vector<32x8xf32>, vector<32x32xf32> -> vector<32x32xf32>
    %52 = arith.addf %51, %18 : vector<32x32xf32>
    %cst_22 = arith.constant dense<0xFF800000> : vector<32xf32>
    %53 = vector.multi_reduction <maximumf>, %52, %cst_22 [1] : vector<32x32xf32> to vector<32xf32>
    %54 = vector.shape_cast %53 : vector<32xf32> to vector<32x1xf32>
    %55 = vector.broadcast %54 : vector<32x1xf32> to vector<32x32xf32>
    %56 = arith.subf %52, %55 : vector<32x32xf32>
    %57 = math.exp %56 : vector<32x32xf32>
    %cst_23 = arith.constant dense<0.000000e+00> : vector<32xf32>
    %58 = vector.multi_reduction <add>, %57, %cst_23 [1] : vector<32x32xf32> to vector<32xf32>
    %59 = vector.shape_cast %58 : vector<32xf32> to vector<32x1xf32>
    %60 = vector.broadcast %59 : vector<32x1xf32> to vector<32x32xf32>
    %61 = arith.divf %57, %60 : vector<32x32xf32>
    %62 = vector.extract_strided_slice %7 {offsets = [0, 16], sizes = [32, 8], strides = [1, 1]} : vector<32x32xf32> to vector<32x8xf32>
    %cst_24 = arith.constant dense<0.000000e+00> : vector<32x8xf32>
    %63 = tpu.matmul %61, %62, %cst_24 {dimension_numbers = #tpu.dot_dimension_numbers<[1], [0], [0], [1], [0, 0, 1, 1], [], []>} : vector<32x32xf32>, vector<32x8xf32>, vector<32x8xf32> -> vector<32x8xf32>
    %64 = vector.extract_strided_slice %12 {offsets = [0, 24], sizes = [32, 8], strides = [1, 1]} : vector<32x32xf32> to vector<32x8xf32>
    %65 = vector.extract_strided_slice %17 {offsets = [0, 24], sizes = [32, 8], strides = [1, 1]} : vector<32x32xf32> to vector<32x8xf32>
    %cst_25 = arith.constant dense<0.000000e+00> : vector<32x32xf32>
    %66 = tpu.matmul %64, %65, %cst_25 {dimension_numbers = #tpu.dot_dimension_numbers<[1], [1], [0], [0], [0, 0, 1, 0], [], []>} : vector<32x8xf32>, vector<32x8xf32>, vector<32x32xf32> -> vector<32x32xf32>
    %67 = arith.addf %66, %18 : vector<32x32xf32>
    %cst_26 = arith.constant dense<0xFF800000> : vector<32xf32>
    %68 = vector.multi_reduction <maximumf>, %67, %cst_26 [1] : vector<32x32xf32> to vector<32xf32>
    %69 = vector.shape_cast %68 : vector<32xf32> to vector<32x1xf32>
    %70 = vector.broadcast %69 : vector<32x1xf32> to vector<32x32xf32>
    %71 = arith.subf %67, %70 : vector<32x32xf32>
    %72 = math.exp %71 : vector<32x32xf32>
    %cst_27 = arith.constant dense<0.000000e+00> : vector<32xf32>
    %73 = vector.multi_reduction <add>, %72, %cst_27 [1] : vector<32x32xf32> to vector<32xf32>
    %74 = vector.shape_cast %73 : vector<32xf32> to vector<32x1xf32>
    %75 = vector.broadcast %74 : vector<32x1xf32> to vector<32x32xf32>
    %76 = arith.divf %72, %75 : vector<32x32xf32>
    %77 = vector.extract_strided_slice %7 {offsets = [0, 24], sizes = [32, 8], strides = [1, 1]} : vector<32x32xf32> to vector<32x8xf32>
    %cst_28 = arith.constant dense<0.000000e+00> : vector<32x8xf32>
    %78 = tpu.matmul %76, %77, %cst_28 {dimension_numbers = #tpu.dot_dimension_numbers<[1], [0], [0], [1], [0, 0, 1, 1], [], []>} : vector<32x32xf32>, vector<32x8xf32>, vector<32x8xf32> -> vector<32x8xf32>
    %79 = tpu.concatenate %33, %48, %63, %78 in 1 : vector<32x8xf32>, vector<32x8xf32>, vector<32x8xf32>, vector<32x8xf32> -> vector<32x32xf32>
    %c0_29 = arith.constant 0 : index
    %c0_30 = arith.constant 0 : index
    %80 = vector.load %arg3[%c0_29, %c0_30] : memref<32x32xf32, #tpu.memory_space<vmem>>, vector<32x32xf32>
    %cst_31 = arith.constant dense<0.000000e+00> : vector<32x32xf32>
    %81 = tpu.matmul %79, %80, %cst_31 {dimension_numbers = #tpu.dot_dimension_numbers<[1], [1], [0], [0], [0, 0, 1, 0], [], []>} : vector<32x32xf32>, vector<32x32xf32>, vector<32x32xf32> -> vector<32x32xf32>
    %c0_32 = arith.constant 0 : index
    %c0_33 = arith.constant 0 : index
    %82 = vector.load %arg9[%c0_32, %c0_33] : memref<32x32xf32, #tpu.memory_space<vmem>>, vector<32x32xf32>
    tpu.vector_store %arg9[%c0_32, %c0_33], %81 {strides = array<i32>} : memref<32x32xf32, #tpu.memory_space<vmem>>, vector<32x32xf32>,
    return
  }
  func.func @transform_0(%arg0: i32) -> (i32, i32) {
    %c0_i32 = arith.constant 0 : i32
    %c0_i32_0 = arith.constant 0 : i32
    %c0_i32_1 = arith.constant 0 : i32
    return %c0_i32, %c0_i32_0 : i32, i32
  }
  func.func @transform_1(%arg0: i32) -> (i32, i32) {
    %c0_i32 = arith.constant 0 : i32
    %c0_i32_0 = arith.constant 0 : i32
    %c0_i32_1 = arith.constant 0 : i32
    return %c0_i32, %c0_i32_0 : i32, i32
  }
  func.func @transform_2(%arg0: i32) -> (i32, i32) {
    %c0_i32 = arith.constant 0 : i32
    %c0_i32_0 = arith.constant 0 : i32
    %c0_i32_1 = arith.constant 0 : i32
    return %c0_i32, %c0_i32_0 : i32, i32
  }
  func.func @transform_3(%arg0: i32) -> (i32, i32) {
    %c0_i32 = arith.constant 0 : i32
    %c0_i32_0 = arith.constant 0 : i32
    %c0_i32_1 = arith.constant 0 : i32
    return %c0_i32, %c0_i32_0 : i32, i32
  }
  func.func @transform_4(%arg0: i32) -> (i32, i32) {
    %c0_i32 = arith.constant 0 : i32
    %c0_i32_0 = arith.constant 0 : i32
    %c0_i32_1 = arith.constant 0 : i32
    return %c0_i32, %c0_i32_0 : i32, i32
  }
  func.func @transform_5(%arg0: i32) -> (i32, i32) {
    %c0_i32 = arith.constant 0 : i32
    %c0_i32_0 = arith.constant 0 : i32
    %c0_i32_1 = arith.constant 0 : i32
    return %c0_i32, %c0_i32_0 : i32, i32
  }
  func.func @transform_6(%arg0: i32) -> (i32, i32) {
    %c0_i32 = arith.constant 0 : i32
    %c0_i32_0 = arith.constant 0 : i32
    %c0_i32_1 = arith.constant 0 : i32
    return %c0_i32, %c0_i32_0 : i32, i32
  }
  func.func @transform_7(%arg0: i32) -> (i32, i32) {
    %c0_i32 = arith.constant 0 : i32
    %c0_i32_0 = arith.constant 0 : i32
    %c0_i32_1 = arith.constant 0 : i32
    return %c0_i32, %c0_i32_0 : i32, i32
  }
  func.func @transform_8(%arg0: i32) -> (i32, i32) {
    %c0_i32 = arith.constant 0 : i32
    %c0_i32_0 = arith.constant 0 : i32
    %c0_i32_1 = arith.constant 0 : i32
    return %c0_i32, %c0_i32_0 : i32, i32
  }
}

</mosaic_0001>

<llo_original>
// kernel: tpu_custom_call.1
$region0: #{tpu_custom_call.1}
  #allocation0 [shape = 'u32[]', space=smem, size = 0x4, offset = 0x4, fixed_abs, tag = 'smem constant byte address 0x4 - core index']
  #allocation1 [shape = 'u32[144,128]{1,0:T(1,128)}', space=vmem, size = 0x12000, scoped, tag = 'internal scratch']
  %s0 = inlined_call_operand.vmem [shape: f32[32,32], index: 0, kind: input, shape index: {}]
  %s1 = inlined_call_operand.vmem [shape: f32[160,32], index: 1, kind: input, shape index: {}]
  %s2 = inlined_call_operand.vmem [shape: f32[32,32], index: 2, kind: input, shape index: {}]
  %s3 = inlined_call_operand.vmem [shape: f32[32,32], index: 3, kind: input, shape index: {}]
  %s4 = inlined_call_operand.vmem [shape: f32[32,32], index: 4, kind: input, shape index: {}]
  %s5 = inlined_call_operand.vmem [shape: f32[32,32], index: 5, kind: input, shape index: {}]
  %s6 = inlined_call_operand.vmem [shape: f32[32,32], index: 6, kind: input, shape index: {}]
  %s7 = inlined_call_operand.vmem [shape: f32[32,32], index: 7, kind: input, shape index: {}]
  %s8 = inlined_call_operand.hbm [shape: f32[32,32], index: 8, kind: output, shape index: {}]
  %s9 = sld [smem:[#allocation0]]
  $region42: #{tpu_custom_call.1} parent=0
    _
  %s11 = ssub.s32 1, %s9
  %s12 = scalar_select 0, %s11, %s9
  $region1: #{tpu_custom_call.1} parent=0
    #allocation2 [shape = 'u8[16384]{0}', space=vmem, size = 0x4000, scoped, tag = 'output window, operand 0, single buffered']
    #allocation3 [shape = 's32[1]{0}', space=sflag, size = 0x4, scoped, tag = 'scoped memory for tpu_custom_call.1']
    %13 = vsyncpa [#allocation3], 0
    // Predicated region
    $region2: #{tpu_custom_call.1} parent=1 // pred_check
      _
    $region3: #{tpu_custom_call.1} parent=1 // pred_check_branch
      %15 = sbr.rel (0) target = $region5
    $region4: #{tpu_custom_call.1} parent=1 // pred_region
      _
    $region5: #{tpu_custom_call.1} parent=1 // pred_fallthru
      _
    // Predicated region
    $region6: #{tpu_custom_call.1} parent=1 // pred_check
      _
    $region7: #{tpu_custom_call.1} parent=1 // pred_check_branch
      %17 = sbr.rel (0) target = $region9
    $region8: #{tpu_custom_call.1} parent=1 // pred_region
      _
    $region9: #{tpu_custom_call.1} parent=1 // pred_fallthru
      _
    // Predicated region
    $region10: #{tpu_custom_call.1} parent=1 // pred_check
      _
    $region11: #{tpu_custom_call.1} parent=1 // pred_check_branch
      %19 = sbr.rel (0) target = $region13
    $region12: #{tpu_custom_call.1} parent=1 // pred_region
      _
    $region13: #{tpu_custom_call.1} parent=1 // pred_fallthru
      _
    // Predicated region
    $region14: #{tpu_custom_call.1} parent=1 // pred_check
      _
    $region15: #{tpu_custom_call.1} parent=1 // pred_check_branch
      %21 = sbr.rel (0) target = $region17
    $region16: #{tpu_custom_call.1} parent=1 // pred_region
      _
    $region17: #{tpu_custom_call.1} parent=1 // pred_fallthru
      _
    // Predicated region
    $region18: #{tpu_custom_call.1} parent=1 // pred_check
      _
    $region19: #{tpu_custom_call.1} parent=1 // pred_check_branch
      %23 = sbr.rel (0) target = $region21
    $region20: #{tpu_custom_call.1} parent=1 // pred_region
      _
    $region21: #{tpu_custom_call.1} parent=1 // pred_fallthru
      _
    // Predicated region
    $region22: #{tpu_custom_call.1} parent=1 // pred_check
      _
    $region23: #{tpu_custom_call.1} parent=1 // pred_check_branch
      %25 = sbr.rel (0) target = $region25
    $region24: #{tpu_custom_call.1} parent=1 // pred_region
      _
    $region25: #{tpu_custom_call.1} parent=1 // pred_fallthru
      _
    // Predicated region
    $region26: #{tpu_custom_call.1} parent=1 // pred_check
      _
    $region27: #{tpu_custom_call.1} parent=1 // pred_check_branch
      %27 = sbr.rel (0) target = $region29
    $region28: #{tpu_custom_call.1} parent=1 // pred_region
      _
    $region29: #{tpu_custom_call.1} parent=1 // pred_fallthru
      _
    // Predicated region
    $region30: #{tpu_custom_call.1} parent=1 // pred_check
      _
    $region31: #{tpu_custom_call.1} parent=1 // pred_check_branch
      %29 = sbr.rel (0) target = $region33
    $region32: #{tpu_custom_call.1} parent=1 // pred_region
      _
    $region33: #{tpu_custom_call.1} parent=1 // pred_fallthru
      _
    %v30 = vld [vmem:[%s0] sm:$0xff]
    %v31 = vld [vmem:[%s0 + $0x8] sm:$0xff]
    %v32 = vld [vmem:[%s0 + $0x10] sm:$0xff]
    %v33 = vld [vmem:[%s0 + $0x18] sm:$0xff]
    %v34 = vld [vmem:[%s1] sm:$0xff]
    %v35 = vld [vmem:[%s1 + $0x8] sm:$0xff]
    %v36 = vld [vmem:[%s1 + $0x10] sm:$0xff]
    %v37 = vld [vmem:[%s1 + $0x18] sm:$0xff]
    %v38 = vld [vmem:[%s1 + $0x20] sm:$0xff]
    %v39 = vld [vmem:[%s1 + $0x28] sm:$0xff]
    %v40 = vld [vmem:[%s1 + $0x30] sm:$0xff]
    %v41 = vld [vmem:[%s1 + $0x38] sm:$0xff]
    %v42 = vld [vmem:[%s1 + $0x40] sm:$0xff]
    %v43 = vld [vmem:[%s1 + $0x48] sm:$0xff]
    %v44 = vld [vmem:[%s1 + $0x50] sm:$0xff]
    %v45 = vld [vmem:[%s1 + $0x58] sm:$0xff]
    %v46 = vld [vmem:[%s1 + $0x60] sm:$0xff]
    %v47 = vld [vmem:[%s1 + $0x68] sm:$0xff]
    %v48 = vld [vmem:[%s1 + $0x70] sm:$0xff]
    %v49 = vld [vmem:[%s1 + $0x78] sm:$0xff]
    %v50 = vld [vmem:[%s1 + $0x80] sm:$0xff]
    %v51 = vld [vmem:[%s1 + $0x88] sm:$0xff]
    %v52 = vld [vmem:[%s1 + $0x90] sm:$0xff]
    %v53 = vld [vmem:[%s1 + $0x98] sm:$0xff]
    %vm54 = vcmask 261120
    %v56 = vsel %vm54, %v30, 0
    %v59 = vsel %vm54, %v31, 0
    %v62 = vsel %vm54, %v32, 0
    %v65 = vsel %vm54, %v33, 0
    %v68 = vsel %vm54, %v34, 0
    %v71 = vsel %vm54, %v35, 0
    %v74 = vsel %vm54, %v36, 0
    %v77 = vsel %vm54, %v37, 0
    %v80 = vsel %vm54, %v38, 0
    %v83 = vsel %vm54, %v39, 0
    %v86 = vsel %vm54, %v40, 0
    %v89 = vsel %vm54, %v41, 0
    %v92 = vsel %vm54, %v42, 0
    %v95 = vsel %vm54, %v43, 0
    %v98 = vsel %vm54, %v44, 0
    %v101 = vsel %vm54, %v45, 0
    %v104 = vsel %vm54, %v46, 0
    %v107 = vsel %vm54, %v47, 0
    %v110 = vsel %vm54, %v48, 0
    %v113 = vsel %vm54, %v49, 0
    %v116 = vsel %vm54, %v50, 0
    %v119 = vsel %vm54, %v51, 0
    %v122 = vsel %vm54, %v52, 0
    %v125 = vsel %vm54, %v53, 0
    %127 = vmatprep.subr.mxu0 0.0
    %128 = vmatpush1.xpose.msra.mxu0 %v68
    %129 = vmatprep.subr.mxu0 0.0
    %130 = vmatpush1.xpose.msra.mxu0 %v71
    %131 = vmatprep.subr.mxu0 0.0
    %132 = vmatpush1.xpose.msra.mxu0 %v74
    %133 = vmatprep.subr.mxu0 0.0
    %134 = vmatpush1.xpose.msra.mxu0 %v77
    %135 = vmatprep.subr.mxu0 0.0
    %136 = vmatpush1.xpose.msra.mxu0 %v80
    %137 = vmatprep.subr.mxu0 0.0
    %138 = vmatpush1.xpose.msra.mxu0 %v83
    %139 = vmatprep.subr.mxu0 0.0
    %140 = vmatpush1.xpose.msra.mxu0 %v86
    %141 = vmatprep.subr.mxu0 0.0
    %142 = vmatpush1.xpose.msra.mxu0 %v89
    %143 = vmatprep.subr.mxu0 0.0
    %144 = vmatpush1.xpose.msra.mxu0 %v92
    %145 = vmatprep.subr.mxu0 0.0
    %146 = vmatpush1.xpose.msra.mxu0 %v95
    %147 = vmatprep.subr.mxu0 0.0
    %148 = vmatpush1.xpose.msra.mxu0 %v98
    %149 = vmatprep.subr.mxu0 0.0
    %150 = vmatpush1.xpose.msra.mxu0 %v101
    %151 = vmatprep.subr.mxu0 0.0
    %152 = vmatpush1.xpose.msra.mxu0 %v104
    %153 = vmatprep.subr.mxu0 0.0
    %154 = vmatpush1.xpose.msra.mxu0 %v107
    %155 = vmatprep.subr.mxu0 0.0
    %156 = vmatpush1.xpose.msra.mxu0 %v110
    %157 = vmatprep.subr.mxu0 0.0
    %158 = vmatpush1.xpose.msra.mxu0 %v113
    %159 = vmatprep.subr.mxu0 0.0
    %160 = vmatpush1.xpose.msra.mxu0 %v116
    %161 = vmatprep.subr.mxu0 0.0
    %162 = vmatpush1.xpose.msra.mxu0 %v119
    %163 = vmatprep.subr.mxu0 0.0
    %164 = vmatpush1.xpose.msra.mxu0 %v122
    %165 = vmatprep.subr.mxu0 0.0
    %166 = vmatpush1.xpose.msra.mxu0 %v125
    %167 = vmatprep.subr.mxu0 0.0
    %168 = vmatpush1.xpose.msra.mxu0 0.0
    %169 = vmatprep.subr.mxu0 0.0
    %170 = vmatpush1.xpose.msra.mxu0 0.0
    %171 = vmatprep.subr.mxu0 0.0
    %172 = vmatpush1.xpose.msra.mxu0 0.0
    %173 = vmatprep.subr.mxu0 0.0
    %174 = vmatpush1.xpose.msra.mxu0 0.0
    %175 = vmatprep.subr.mxu0 0.0
    %176 = vmatpush1.xpose.msra.mxu0 0.0
    %177 = vmatprep.subr.mxu0 0.0
    %178 = vmatpush1.xpose.msra.mxu0 0.0
    %179 = vmatprep.subr.mxu0 0.0
    %180 = vmatpush1.xpose.msra.mxu0 0.0
    %181 = vmatprep.subr.mxu0 0.0
    %182 = vmatpush1.xpose.msra.mxu0 0.0
    %183 = vmatprep.subr.mxu0 0.0
    %184 = vmatpush1.xpose.msra.mxu0 0.0
    %185 = vmatprep.subr.mxu0 0.0
    %186 = vmatpush1.xpose.msra.mxu0 0.0
    %187 = vmatprep.subr.mxu0 0.0
    %188 = vmatpush1.xpose.msra.mxu0 0.0
    %189 = vmatprep.subr.mxu0 0.0
    %190 = vmatpush1.xpose.msra.mxu0 0.0
    %191 = vmatprep.mubr.f32.mxu0 0.0
    %192 = vmatmul.mubr.f32.gmra.mrb[0].mxu0 %v56
    %v193 = vpop.f32.mrb[0].mxu0
    %v194 = vadd.f32 0.0, %v193
    %v195 = vpop.f32.mrb[0].mxu0
    %v196 = vadd.f32 0.0, %v195
    %197 = vmatprep.mubr.f32.mxu0 0.0
    %198 = vmatmul.mubr.f32.gmra.mrb[0].mxu0 %v59
    %v199 = vpop.f32.mrb[0].mxu0
    %v200 = vadd.f32 0.0, %v199
    %v201 = vpop.f32.mrb[0].mxu0
    %v202 = vadd.f32 0.0, %v201
    %203 = vmatprep.mubr.f32.mxu0 0.0
    %204 = vmatmul.mubr.f32.gmra.mrb[0].mxu0 %v62
    %v205 = vpop.f32.mrb[0].mxu0
    %v206 = vadd.f32 0.0, %v205
    %v207 = vpop.f32.mrb[0].mxu0
    %v208 = vadd.f32 0.0, %v207
    %209 = vmatprep.mubr.f32.mxu0 0.0
    %210 = vmatmul.mubr.f32.gmra.mrb[0].mxu0 %v65
    %v211 = vpop.f32.mrb[0].mxu0
    %v212 = vadd.f32 0.0, %v211
    %v213 = vpop.f32.mrb[0].mxu0
    %v214 = vadd.f32 0.0, %v213
    %215 = vdwg.mxu0
    %v216 = vld [vmem:[%s3] sm:$0xff]
    %v217 = vld [vmem:[%s3 + $0x8] sm:$0xff]
    %v218 = vld [vmem:[%s3 + $0x10] sm:$0xff]
    %v219 = vld [vmem:[%s3 + $0x18] sm:$0xff]
    %v220 = vmul.f32 %v194, %v216
    %v221 = vmul.f32 %v200, %v217
    %v222 = vmul.f32 %v206, %v218
    %v223 = vmul.f32 %v212, %v219
    %v224 = vld [vmem:[%s4] sm:$0xff]
    %v225 = vld [vmem:[%s4 + $0x8] sm:$0xff]
    %v226 = vld [vmem:[%s4 + $0x10] sm:$0xff]
    %v227 = vld [vmem:[%s4 + $0x18] sm:$0xff]
    %232 = vrot.lane.b32.xlu0 %v224, 32
    %v233 = vpop.permute.xlu0 %232
    %234 = vrot.lane.b32.xlu0 %v225, 32
    %v235 = vpop.permute.xlu0 %234
    %236 = vrot.lane.b32.xlu0 %v226, 32
    %v237 = vpop.permute.xlu0 %236
    %238 = vrot.lane.b32.xlu0 %v227, 32
    %v239 = vpop.permute.xlu0 %238
    %v244 = vmul.f32 %v194, %v233
    %v245 = vmul.f32 %v200, %v235
    %v246 = vmul.f32 %v206, %v237
    %v247 = vmul.f32 %v212, %v239
    %252 = vrot.lane.b32.xlu0 %v244, 96
    %v253 = vpop.permute.xlu0 %252
    %254 = vrot.lane.b32.xlu0 %v245, 96
    %v255 = vpop.permute.xlu0 %254
    %256 = vrot.lane.b32.xlu0 %v246, 96
    %v257 = vpop.permute.xlu0 %256
    %258 = vrot.lane.b32.xlu0 %v247, 96
    %v259 = vpop.permute.xlu0 %258
    %v264 = vadd.f32 %v220, %v253
    %v265 = vadd.f32 %v221, %v255
    %v266 = vadd.f32 %v222, %v257
    %v267 = vadd.f32 %v223, %v259
    %v268 = vld [vmem:[%s5] sm:$0xff]
    %v269 = vld [vmem:[%s5 + $0x8] sm:$0xff]
    %v270 = vld [vmem:[%s5 + $0x10] sm:$0xff]
    %v271 = vld [vmem:[%s5 + $0x18] sm:$0xff]
    %276 = vrot.lane.b32.xlu0 %v268, 64
    %v277 = vpop.permute.xlu0 %276
    %278 = vrot.lane.b32.xlu0 %v269, 64
    %v279 = vpop.permute.xlu0 %278
    %280 = vrot.lane.b32.xlu0 %v270, 64
    %v281 = vpop.permute.xlu0 %280
    %282 = vrot.lane.b32.xlu0 %v271, 64
    %v283 = vpop.permute.xlu0 %282
    %v288 = vmul.f32 %v194, %v277
    %v289 = vmul.f32 %v200, %v279
    %v290 = vmul.f32 %v206, %v281
    %v291 = vmul.f32 %v212, %v283
    %v292 = vld [vmem:[%s6] sm:$0xff]
    %v293 = vld [vmem:[%s6 + $0x8] sm:$0xff]
    %v294 = vld [vmem:[%s6 + $0x10] sm:$0xff]
    %v295 = vld [vmem:[%s6 + $0x18] sm:$0xff]
    %300 = vrot.lane.b32.xlu0 %v292, 96
    %v301 = vpop.permute.xlu0 %300
    %302 = vrot.lane.b32.xlu0 %v293, 96
    %v303 = vpop.permute.xlu0 %302
    %304 = vrot.lane.b32.xlu0 %v294, 96
    %v305 = vpop.permute.xlu0 %304
    %306 = vrot.lane.b32.xlu0 %v295, 96
    %v307 = vpop.permute.xlu0 %306
    %v312 = vmul.f32 %v194, %v301
    %v313 = vmul.f32 %v200, %v303
    %v314 = vmul.f32 %v206, %v305
    %v315 = vmul.f32 %v212, %v307
    %320 = vrot.lane.b32.xlu0 %v312, 96
    %v321 = vpop.permute.xlu0 %320
    %322 = vrot.lane.b32.xlu0 %v313, 96
    %v323 = vpop.permute.xlu0 %322
    %324 = vrot.lane.b32.xlu0 %v314, 96
    %v325 = vpop.permute.xlu0 %324
    %326 = vrot.lane.b32.xlu0 %v315, 96
    %v327 = vpop.permute.xlu0 %326
    %v332 = vadd.f32 %v288, %v321
    %v333 = vadd.f32 %v289, %v323
    %v334 = vadd.f32 %v290, %v325
    %v335 = vadd.f32 %v291, %v327
    %v336 = vld [vmem:[%s7] sm:$0xff]
    %v337 = vld [vmem:[%s7 + $0x8] sm:$0xff]
    %v338 = vld [vmem:[%s7 + $0x10] sm:$0xff]
    %v339 = vld [vmem:[%s7 + $0x18] sm:$0xff]
    %344 = vrot.lane.b32.xlu0 %v332, 64
    %v345 = vpop.permute.xlu0 %344
    %346 = vrot.lane.b32.xlu0 %v333, 64
    %v347 = vpop.permute.xlu0 %346
    %348 = vrot.lane.b32.xlu0 %v334, 64
    %v349 = vpop.permute.xlu0 %348
    %350 = vrot.lane.b32.xlu0 %v335, 64
    %v351 = vpop.permute.xlu0 %350
    %vm352 = vcmask 64512
    %v354 = vsel %vm352, %v264, 0
    %v357 = vsel %vm352, %v265, 0
    %v360 = vsel %vm352, %v266, 0
    %v363 = vsel %vm352, %v267, 0
    %v365 = vsel %vm352, %v345, 0
    %v367 = vsel %vm352, %v347, 0
    %v369 = vsel %vm352, %v349, 0
    %v371 = vsel %vm352, %v351, 0
    %373 = vmatprep.subr.mxu0 0.0
    %374 = vmatpush1.xpose.msra.mxu0 %v365
    %375 = vmatprep.subr.mxu0 0.0
    %376 = vmatpush1.xpose.msra.mxu0 %v367
    %377 = vmatprep.subr.mxu0 0.0
    %378 = vmatpush1.xpose.msra.mxu0 %v369
    %379 = vmatprep.subr.mxu0 0.0
    %380 = vmatpush1.xpose.msra.mxu0 %v371
    %381 = vmatprep.subr.mxu0 0.0
    %382 = vmatpush1.xpose.msra.mxu0 0.0
    %383 = vmatprep.subr.mxu0 0.0
    %384 = vmatpush1.xpose.msra.mxu0 0.0
    %385 = vmatprep.subr.mxu0 0.0
    %386 = vmatpush1.xpose.msra.mxu0 0.0
    %387 = vmatprep.subr.mxu0 0.0
    %388 = vmatpush1.xpose.msra.mxu0 0.0
    %389 = vmatprep.subr.mxu0 0.0
    %390 = vmatpush1.xpose.msra.mxu0 0.0
    %391 = vmatprep.subr.mxu0 0.0
    %392 = vmatpush1.xpose.msra.mxu0 0.0
    %393 = vmatprep.subr.mxu0 0.0
    %394 = vmatpush1.xpose.msra.mxu0 0.0
    %395 = vmatprep.subr.mxu0 0.0
    %396 = vmatpush1.xpose.msra.mxu0 0.0
    %397 = vmatprep.subr.mxu0 0.0
    %398 = vmatpush1.xpose.msra.mxu0 0.0
    %399 = vmatprep.subr.mxu0 0.0
    %400 = vmatpush1.xpose.msra.mxu0 0.0
    %401 = vmatprep.subr.mxu0 0.0
    %402 = vmatpush1.xpose.msra.mxu0 0.0
    %403 = vmatprep.subr.mxu0 0.0
    %404 = vmatpush1.xpose.msra.mxu0 0.0
    %405 = vmatprep.subr.mxu0 0.0
    %406 = vmatpush1.xpose.msra.mxu0 0.0
    %407 = vmatprep.subr.mxu0 0.0
    %408 = vmatpush1.xpose.msra.mxu0 0.0
    %409 = vmatprep.subr.mxu0 0.0
    %410 = vmatpush1.xpose.msra.mxu0 0.0
    %411 = vmatprep.subr.mxu0 0.0
    %412 = vmatpush1.xpose.msra.mxu0 0.0
    %413 = vmatprep.subr.mxu0 0.0
    %414 = vmatpush1.xpose.msra.mxu0 0.0
    %415 = vmatprep.subr.mxu0 0.0
    %416 = vmatpush1.xpose.msra.mxu0 0.0
    %417 = vmatprep.subr.mxu0 0.0
    %418 = vmatpush1.xpose.msra.mxu0 0.0
    %419 = vmatprep.subr.mxu0 0.0
    %420 = vmatpush1.xpose.msra.mxu0 0.0
    %421 = vmatprep.subr.mxu0 0.0
    %422 = vmatpush1.xpose.msra.mxu0 0.0
    %423 = vmatprep.subr.mxu0 0.0
    %424 = vmatpush1.xpose.msra.mxu0 0.0
    %425 = vmatprep.subr.mxu0 0.0
    %426 = vmatpush1.xpose.msra.mxu0 0.0
    %427 = vmatprep.subr.mxu0 0.0
    %428 = vmatpush1.xpose.msra.mxu0 0.0
    %429 = vmatprep.subr.mxu0 0.0
    %430 = vmatpush1.xpose.msra.mxu0 0.0
    %431 = vmatprep.subr.mxu0 0.0
    %432 = vmatpush1.xpose.msra.mxu0 0.0
    %433 = vmatprep.subr.mxu0 0.0
    %434 = vmatpush1.xpose.msra.mxu0 0.0
    %435 = vmatprep.subr.mxu0 0.0
    %436 = vmatpush1.xpose.msra.mxu0 0.0
    %437 = vmatprep.mubr.f32.mxu0 0.0
    %438 = vmatmul.mubr.f32.gmra.mrb[0].mxu0 %v354
    %v439 = vpop.f32.mrb[0].mxu0
    %v440 = vadd.f32 %v336, %v439
    %v441 = vpop.f32.mrb[0].mxu0
    %442 = vmatprep.mubr.f32.mxu0 0.0
    %443 = vmatmul.mubr.f32.gmra.mrb[0].mxu0 %v357
    %v444 = vpop.f32.mrb[0].mxu0
    %v445 = vadd.f32 %v337, %v444
    %v446 = vpop.f32.mrb[0].mxu0
    %447 = vmatprep.mubr.f32.mxu0 0.0
    %448 = vmatmul.mubr.f32.gmra.mrb[0].mxu0 %v360
    %v449 = vpop.f32.mrb[0].mxu0
    %v450 = vadd.f32 %v338, %v449
    %v451 = vpop.f32.mrb[0].mxu0
    %452 = vmatprep.mubr.f32.mxu0 0.0
    %453 = vmatmul.mubr.f32.gmra.mrb[0].mxu0 %v363
    %v454 = vpop.f32.mrb[0].mxu0
    %v455 = vadd.f32 %v339, %v454
    %v456 = vpop.f32.mrb[0].mxu0
    %457 = vdwg.mxu0
    %v458 = vsel %vm54, %v440, -inf
    %459 = vmax.xlane.f32.xlu0 %v458
    %v460 = vpop.xlane.xlu0 %459
    %v461 = vsel %vm54, %v445, -inf
    %462 = vmax.xlane.f32.xlu0 %v461
    %v463 = vpop.xlane.xlu0 %462
    %v464 = vsel %vm54, %v450, -inf
    %465 = vmax.xlane.f32.xlu0 %v464
    %v466 = vpop.xlane.xlu0 %465
    %v467 = vsel %vm54, %v455, -inf
    %468 = vmax.xlane.f32.xlu0 %v467
    %v469 = vpop.xlane.xlu0 %468
    %v470 = vsub.f32 %v440, %v460
    %v471 = vsub.f32 %v445, %v463
    %v472 = vsub.f32 %v450, %v466
    %v473 = vsub.f32 %v455, %v469
    %v474 = vmul.f32 %v470, 1.442695
    %v475 = vpow.pop %v474
    %v476 = vmul.f32 %v471, 1.442695
    %v477 = vpow.pop %v476
    %v478 = vmul.f32 %v472, 1.442695
    %v479 = vpow.pop %v478
    %v480 = vmul.f32 %v473, 1.442695
    %v481 = vpow.pop %v480
    %v482 = vsel %vm54, %v475, 0.0
    %483 = vadd.xlane.f32.xlu0 %v482
    %v484 = vpop.xlane.xlu0 %483
    %v485 = vsel %vm54, %v477, 0.0
    %486 = vadd.xlane.f32.xlu0 %v485
    %v487 = vpop.xlane.xlu0 %486
    %v488 = vsel %vm54, %v479, 0.0
    %489 = vadd.xlane.f32.xlu0 %v488
    %v490 = vpop.xlane.xlu0 %489
    %v491 = vsel %vm54, %v481, 0.0
    %492 = vadd.xlane.f32.xlu0 %v491
    %v493 = vpop.xlane.xlu0 %492
    %v494 = vrcp.pop %v484
    %v495 = vmul.f32 %v475, %v494
    %v496 = vrcp.pop %v487
    %v497 = vmul.f32 %v477, %v496
    %v498 = vrcp.pop %v490
    %v499 = vmul.f32 %v479, %v498
    %v500 = vrcp.pop %v493
    %v501 = vmul.f32 %v481, %v500
    %v503 = vsel %vm54, %v495, 0
    %v506 = vsel %vm54, %v497, 0
    %v509 = vsel %vm54, %v499, 0
    %v512 = vsel %vm54, %v501, 0
    %514 = vmatprep.subr.mxu0 0.0
    %515 = vmatpush1.msra.mxu0 %v196
    %516 = vmatprep.subr.mxu0 0.0
    %517 = vmatpush1.msra.mxu0 %v202
    %518 = vmatprep.subr.mxu0 0.0
    %519 = vmatpush1.msra.mxu0 %v208
    %520 = vmatprep.subr.mxu0 0.0
    %521 = vmatpush1.msra.mxu0 %v214
    %522 = vmatprep.subr.mxu0 0.0
    %523 = vmatpush1.msra.mxu0 0.0
    %524 = vmatprep.subr.mxu0 0.0
    %525 = vmatpush1.msra.mxu0 0.0
    %526 = vmatprep.subr.mxu0 0.0
    %527 = vmatpush1.msra.mxu0 0.0
    %528 = vmatprep.subr.mxu0 0.0
    %529 = vmatpush1.msra.mxu0 0.0
    %530 = vmatprep.subr.mxu0 0.0
    %531 = vmatpush1.msra.mxu0 0.0
    %532 = vmatprep.subr.mxu0 0.0
    %533 = vmatpush1.msra.mxu0 0.0
    %534 = vmatprep.subr.mxu0 0.0
    %535 = vmatpush1.msra.mxu0 0.0
    %536 = vmatprep.subr.mxu0 0.0
    %537 = vmatpush1.msra.mxu0 0.0
    %538 = vmatprep.subr.mxu0 0.0
    %539 = vmatpush1.msra.mxu0 0.0
    %540 = vmatprep.subr.mxu0 0.0
    %541 = vmatpush1.msra.mxu0 0.0
    %542 = vmatprep.subr.mxu0 0.0
    %543 = vmatpush1.msra.mxu0 0.0
    %544 = vmatprep.subr.mxu0 0.0
    %545 = vmatpush1.msra.mxu0 0.0
    %546 = vmatprep.subr.mxu0 0.0
    %547 = vmatpush1.msra.mxu0 0.0
    %548 = vmatprep.subr.mxu0 0.0
    %549 = vmatpush1.msra.mxu0 0.0
    %550 = vmatprep.subr.mxu0 0.0
    %551 = vmatpush1.msra.mxu0 0.0
    %552 = vmatprep.subr.mxu0 0.0
    %553 = vmatpush1.msra.mxu0 0.0
    %554 = vmatprep.subr.mxu0 0.0
    %555 = vmatpush1.msra.mxu0 0.0
    %556 = vmatprep.subr.mxu0 0.0
    %557 = vmatpush1.msra.mxu0 0.0
    %558 = vmatprep.subr.mxu0 0.0
    %559 = vmatpush1.msra.mxu0 0.0
    %560 = vmatprep.subr.mxu0 0.0
    %561 = vmatpush1.msra.mxu0 0.0
    %562 = vmatprep.subr.mxu0 0.0
    %563 = vmatpush1.msra.mxu0 0.0
    %564 = vmatprep.subr.mxu0 0.0
    %565 = vmatpush1.msra.mxu0 0.0
    %566 = vmatprep.subr.mxu0 0.0
    %567 = vmatpush1.msra.mxu0 0.0
    %568 = vmatprep.subr.mxu0 0.0
    %569 = vmatpush1.msra.mxu0 0.0
    %570 = vmatprep.subr.mxu0 0.0
    %571 = vmatpush1.msra.mxu0 0.0
    %572 = vmatprep.subr.mxu0 0.0
    %573 = vmatpush1.msra.mxu0 0.0
    %574 = vmatprep.subr.mxu0 0.0
    %575 = vmatpush1.msra.mxu0 0.0
    %576 = vmatprep.subr.mxu0 0.0
    %577 = vmatpush1.msra.mxu0 0.0
    %578 = vmatprep.mubr.f32.mxu0 0.0
    %579 = vmatmul.mubr.f32.gmra.mrb[0].mxu0 %v503
    %v580 = vpop.f32.mrb[0].mxu0
    %v581 = vadd.f32 0.0, %v580
    %v582 = vpop.f32.mrb[0].mxu0
    %583 = vmatprep.mubr.f32.mxu0 0.0
    %584 = vmatmul.mubr.f32.gmra.mrb[0].mxu0 %v506
    %v585 = vpop.f32.mrb[0].mxu0
    %v586 = vadd.f32 0.0, %v585
    %v587 = vpop.f32.mrb[0].mxu0
    %588 = vmatprep.mubr.f32.mxu0 0.0
    %589 = vmatmul.mubr.f32.gmra.mrb[0].mxu0 %v509
    %v590 = vpop.f32.mrb[0].mxu0
    %v591 = vadd.f32 0.0, %v590
    %v592 = vpop.f32.mrb[0].mxu0
    %593 = vmatprep.mubr.f32.mxu0 0.0
    %594 = vmatmul.mubr.f32.gmra.mrb[0].mxu0 %v512
    %v595 = vpop.f32.mrb[0].mxu0
    %v596 = vadd.f32 0.0, %v595
    %v597 = vpop.f32.mrb[0].mxu0
    %598 = vdwg.mxu0
    %599 = vrot.lane.b32.xlu0 %v264, 120
    %v600 = vpop.permute.xlu0 %599
    %601 = vrot.lane.b32.xlu0 %v265, 120
    %v602 = vpop.permute.xlu0 %601
    %603 = vrot.lane.b32.xlu0 %v266, 120
    %v604 = vpop.permute.xlu0 %603
    %605 = vrot.lane.b32.xlu0 %v267, 120
    %v606 = vpop.permute.xlu0 %605
    %607 = vrot.lane.b32.xlu0 %v332, 56
    %v608 = vpop.permute.xlu0 %607
    %609 = vrot.lane.b32.xlu0 %v333, 56
    %v610 = vpop.permute.xlu0 %609
    %611 = vrot.lane.b32.xlu0 %v334, 56
    %v612 = vpop.permute.xlu0 %611
    %613 = vrot.lane.b32.xlu0 %v335, 56
    %v614 = vpop.permute.xlu0 %613
    %v615 = vsel %vm352, %v600, 0
    %v617 = vsel %vm352, %v602, 0
    %v619 = vsel %vm352, %v604, 0
    %v621 = vsel %vm352, %v606, 0
    %v623 = vsel %vm352, %v608, 0
    %v625 = vsel %vm352, %v610, 0
    %v627 = vsel %vm352, %v612, 0
    %v629 = vsel %vm352, %v614, 0
    %631 = vmatprep.subr.mxu0 0.0
    %632 = vmatpush1.xpose.msra.mxu0 %v623
    %633 = vmatprep.subr.mxu0 0.0
    %634 = vmatpush1.xpose.msra.mxu0 %v625
    %635 = vmatprep.subr.mxu0 0.0
    %636 = vmatpush1.xpose.msra.mxu0 %v627
    %637 = vmatprep.subr.mxu0 0.0
    %638 = vmatpush1.xpose.msra.mxu0 %v629
    %639 = vmatprep.subr.mxu0 0.0
    %640 = vmatpush1.xpose.msra.mxu0 0.0
    %641 = vmatprep.subr.mxu0 0.0
    %642 = vmatpush1.xpose.msra.mxu0 0.0
    %643 = vmatprep.subr.mxu0 0.0
    %644 = vmatpush1.xpose.msra.mxu0 0.0
    %645 = vmatprep.subr.mxu0 0.0
    %646 = vmatpush1.xpose.msra.mxu0 0.0
    %647 = vmatprep.subr.mxu0 0.0
    %648 = vmatpush1.xpose.msra.mxu0 0.0
    %649 = vmatprep.subr.mxu0 0.0
    %650 = vmatpush1.xpose.msra.mxu0 0.0
    %651 = vmatprep.subr.mxu0 0.0
    %652 = vmatpush1.xpose.msra.mxu0 0.0
    %653 = vmatprep.subr.mxu0 0.0
    %654 = vmatpush1.xpose.msra.mxu0 0.0
    %655 = vmatprep.subr.mxu0 0.0
    %656 = vmatpush1.xpose.msra.mxu0 0.0
    %657 = vmatprep.subr.mxu0 0.0
    %658 = vmatpush1.xpose.msra.mxu0 0.0
    %659 = vmatprep.subr.mxu0 0.0
    %660 = vmatpush1.xpose.msra.mxu0 0.0
    %661 = vmatprep.subr.mxu0 0.0
    %662 = vmatpush1.xpose.msra.mxu0 0.0
    %663 = vmatprep.subr.mxu0 0.0
    %664 = vmatpush1.xpose.msra.mxu0 0.0
    %665 = vmatprep.subr.mxu0 0.0
    %666 = vmatpush1.xpose.msra.mxu0 0.0
    %667 = vmatprep.subr.mxu0 0.0
    %668 = vmatpush1.xpose.msra.mxu0 0.0
    %669 = vmatprep.subr.mxu0 0.0
    %670 = vmatpush1.xpose.msra.mxu0 0.0
    %671 = vmatprep.subr.mxu0 0.0
    %672 = vmatpush1.xpose.msra.mxu0 0.0
    %673 = vmatprep.subr.mxu0 0.0
    %674 = vmatpush1.xpose.msra.mxu0 0.0
    %675 = vmatprep.subr.mxu0 0.0
    %676 = vmatpush1.xpose.msra.mxu0 0.0
    %677 = vmatprep.subr.mxu0 0.0
    %678 = vmatpush1.xpose.msra.mxu0 0.0
    %679 = vmatprep.subr.mxu0 0.0
    %680 = vmatpush1.xpose.msra.mxu0 0.0
    %681 = vmatprep.subr.mxu0 0.0
    %682 = vmatpush1.xpose.msra.mxu0 0.0
    %683 = vmatprep.subr.mxu0 0.0
    %684 = vmatpush1.xpose.msra.mxu0 0.0
    %685 = vmatprep.subr.mxu0 0.0
    %686 = vmatpush1.xpose.msra.mxu0 0.0
    %687 = vmatprep.subr.mxu0 0.0
    %688 = vmatpush1.xpose.msra.mxu0 0.0
    %689 = vmatprep.subr.mxu0 0.0
    %690 = vmatpush1.xpose.msra.mxu0 0.0
    %691 = vmatprep.subr.mxu0 0.0
    %692 = vmatpush1.xpose.msra.mxu0 0.0
    %693 = vmatprep.subr.mxu0 0.0
    %694 = vmatpush1.xpose.msra.mxu0 0.0
    %695 = vmatprep.mubr.f32.mxu0 0.0
    %696 = vmatmul.mubr.f32.gmra.mrb[0].mxu0 %v615
    %v697 = vpop.f32.mrb[0].mxu0
    %v698 = vadd.f32 %v336, %v697
    %v699 = vpop.f32.mrb[0].mxu0
    %700 = vmatprep.mubr.f32.mxu0 0.0
    %701 = vmatmul.mubr.f32.gmra.mrb[0].mxu0 %v617
    %v702 = vpop.f32.mrb[0].mxu0
    %v703 = vadd.f32 %v337, %v702
    %v704 = vpop.f32.mrb[0].mxu0
    %705 = vmatprep.mubr.f32.mxu0 0.0
    %706 = vmatmul.mubr.f32.gmra.mrb[0].mxu0 %v619
    %v707 = vpop.f32.mrb[0].mxu0
    %v708 = vadd.f32 %v338, %v707
    %v709 = vpop.f32.mrb[0].mxu0
    %710 = vmatprep.mubr.f32.mxu0 0.0
    %711 = vmatmul.mubr.f32.gmra.mrb[0].mxu0 %v621
    %v712 = vpop.f32.mrb[0].mxu0
    %v713 = vadd.f32 %v339, %v712
    %v714 = vpop.f32.mrb[0].mxu0
    %715 = vdwg.mxu0
    %v716 = vsel %vm54, %v698, -inf
    %717 = vmax.xlane.f32.xlu0 %v716
    %v718 = vpop.xlane.xlu0 %717
    %v719 = vsel %vm54, %v703, -inf
    %720 = vmax.xlane.f32.xlu0 %v719
    %v721 = vpop.xlane.xlu0 %720
    %v722 = vsel %vm54, %v708, -inf
    %723 = vmax.xlane.f32.xlu0 %v722
    %v724 = vpop.xlane.xlu0 %723
    %v725 = vsel %vm54, %v713, -inf
    %726 = vmax.xlane.f32.xlu0 %v725
    %v727 = vpop.xlane.xlu0 %726
    %v728 = vsub.f32 %v698, %v718
    %v729 = vsub.f32 %v703, %v721
    %v730 = vsub.f32 %v708, %v724
    %v731 = vsub.f32 %v713, %v727
    %v732 = vmul.f32 %v728, 1.442695
    %v733 = vpow.pop %v732
    %v734 = vmul.f32 %v729, 1.442695
    %v735 = vpow.pop %v734
    %v736 = vmul.f32 %v730, 1.442695
    %v737 = vpow.pop %v736
    %v738 = vmul.f32 %v731, 1.442695
    %v739 = vpow.pop %v738
    %v740 = vsel %vm54, %v733, 0.0
    %741 = vadd.xlane.f32.xlu0 %v740
    %v742 = vpop.xlane.xlu0 %741
    %v743 = vsel %vm54, %v735, 0.0
    %744 = vadd.xlane.f32.xlu0 %v743
    %v745 = vpop.xlane.xlu0 %744
    %v746 = vsel %vm54, %v737, 0.0
    %747 = vadd.xlane.f32.xlu0 %v746
    %v748 = vpop.xlane.xlu0 %747
    %v749 = vsel %vm54, %v739, 0.0
    %750 = vadd.xlane.f32.xlu0 %v749
    %v751 = vpop.xlane.xlu0 %750
    %v752 = vrcp.pop %v742
    %v753 = vmul.f32 %v733, %v752
    %v754 = vrcp.pop %v745
    %v755 = vmul.f32 %v735, %v754
    %v756 = vrcp.pop %v748
    %v757 = vmul.f32 %v737, %v756
    %v758 = vrcp.pop %v751
    %v759 = vmul.f32 %v739, %v758
    %764 = vrot.lane.b32.xlu0 %v196, 120
    %v765 = vpop.permute.xlu0 %764
    %766 = vrot.lane.b32.xlu0 %v202, 120
    %v767 = vpop.permute.xlu0 %766
    %768 = vrot.lane.b32.xlu0 %v208, 120
    %v769 = vpop.permute.xlu0 %768
    %770 = vrot.lane.b32.xlu0 %v214, 120
    %v771 = vpop.permute.xlu0 %770
    %v777 = vsel %vm54, %v753, 0
    %v780 = vsel %vm54, %v755, 0
    %v783 = vsel %vm54, %v757, 0
    %v786 = vsel %vm54, %v759, 0
    %788 = vmatprep.subr.mxu0 0.0
    %789 = vmatpush1.msra.mxu0 %v765
    %790 = vmatprep.subr.mxu0 0.0
    %791 = vmatpush1.msra.mxu0 %v767
    %792 = vmatprep.subr.mxu0 0.0
    %793 = vmatpush1.msra.mxu0 %v769
    %794 = vmatprep.subr.mxu0 0.0
    %795 = vmatpush1.msra.mxu0 %v771
    %796 = vmatprep.subr.mxu0 0.0
    %797 = vmatpush1.msra.mxu0 0.0
    %798 = vmatprep.subr.mxu0 0.0
    %799 = vmatpush1.msra.mxu0 0.0
    %800 = vmatprep.subr.mxu0 0.0
    %801 = vmatpush1.msra.mxu0 0.0
    %802 = vmatprep.subr.mxu0 0.0
    %803 = vmatpush1.msra.mxu0 0.0
    %804 = vmatprep.subr.mxu0 0.0
    %805 = vmatpush1.msra.mxu0 0.0
    %806 = vmatprep.subr.mxu0 0.0
    %807 = vmatpush1.msra.mxu0 0.0
    %808 = vmatprep.subr.mxu0 0.0
    %809 = vmatpush1.msra.mxu0 0.0
    %810 = vmatprep.subr.mxu0 0.0
    %811 = vmatpush1.msra.mxu0 0.0
    %812 = vmatprep.subr.mxu0 0.0
    %813 = vmatpush1.msra.mxu0 0.0
    %814 = vmatprep.subr.mxu0 0.0
    %815 = vmatpush1.msra.mxu0 0.0
    %816 = vmatprep.subr.mxu0 0.0
    %817 = vmatpush1.msra.mxu0 0.0
    %818 = vmatprep.subr.mxu0 0.0
    %819 = vmatpush1.msra.mxu0 0.0
    %820 = vmatprep.subr.mxu0 0.0
    %821 = vmatpush1.msra.mxu0 0.0
    %822 = vmatprep.subr.mxu0 0.0
    %823 = vmatpush1.msra.mxu0 0.0
    %824 = vmatprep.subr.mxu0 0.0
    %825 = vmatpush1.msra.mxu0 0.0
    %826 = vmatprep.subr.mxu0 0.0
    %827 = vmatpush1.msra.mxu0 0.0
    %828 = vmatprep.subr.mxu0 0.0
    %829 = vmatpush1.msra.mxu0 0.0
    %830 = vmatprep.subr.mxu0 0.0
    %831 = vmatpush1.msra.mxu0 0.0
    %832 = vmatprep.subr.mxu0 0.0
    %833 = vmatpush1.msra.mxu0 0.0
    %834 = vmatprep.subr.mxu0 0.0
    %835 = vmatpush1.msra.mxu0 0.0
    %836 = vmatprep.subr.mxu0 0.0
    %837 = vmatpush1.msra.mxu0 0.0
    %838 = vmatprep.subr.mxu0 0.0
    %839 = vmatpush1.msra.mxu0 0.0
    %840 = vmatprep.subr.mxu0 0.0
    %841 = vmatpush1.msra.mxu0 0.0
    %842 = vmatprep.subr.mxu0 0.0
    %843 = vmatpush1.msra.mxu0 0.0
    %844 = vmatprep.subr.mxu0 0.0
    %845 = vmatpush1.msra.mxu0 0.0
    %846 = vmatprep.subr.mxu0 0.0
    %847 = vmatpush1.msra.mxu0 0.0
    %848 = vmatprep.subr.mxu0 0.0
    %849 = vmatpush1.msra.mxu0 0.0
    %850 = vmatprep.subr.mxu0 0.0
    %851 = vmatpush1.msra.mxu0 0.0
    %852 = vmatprep.mubr.f32.mxu0 0.0
    %853 = vmatmul.mubr.f32.gmra.mrb[0].mxu0 %v777
    %v854 = vpop.f32.mrb[0].mxu0
    %v855 = vadd.f32 0.0, %v854
    %v856 = vpop.f32.mrb[0].mxu0
    %857 = vmatprep.mubr.f32.mxu0 0.0
    %858 = vmatmul.mubr.f32.gmra.mrb[0].mxu0 %v780
    %v859 = vpop.f32.mrb[0].mxu0
    %v860 = vadd.f32 0.0, %v859
    %v861 = vpop.f32.mrb[0].mxu0
    %862 = vmatprep.mubr.f32.mxu0 0.0
    %863 = vmatmul.mubr.f32.gmra.mrb[0].mxu0 %v783
    %v864 = vpop.f32.mrb[0].mxu0
    %v865 = vadd.f32 0.0, %v864
    %v866 = vpop.f32.mrb[0].mxu0
    %867 = vmatprep.mubr.f32.mxu0 0.0
    %868 = vmatmul.mubr.f32.gmra.mrb[0].mxu0 %v786
    %v869 = vpop.f32.mrb[0].mxu0
    %v870 = vadd.f32 0.0, %v869
    %v871 = vpop.f32.mrb[0].mxu0
    %872 = vdwg.mxu0
    %873 = vrot.lane.b32.xlu0 %v264, 112
    %v874 = vpop.permute.xlu0 %873
    %875 = vrot.lane.b32.xlu0 %v265, 112
    %v876 = vpop.permute.xlu0 %875
    %877 = vrot.lane.b32.xlu0 %v266, 112
    %v878 = vpop.permute.xlu0 %877
    %879 = vrot.lane.b32.xlu0 %v267, 112
    %v880 = vpop.permute.xlu0 %879
    %881 = vrot.lane.b32.xlu0 %v332, 48
    %v882 = vpop.permute.xlu0 %881
    %883 = vrot.lane.b32.xlu0 %v333, 48
    %v884 = vpop.permute.xlu0 %883
    %885 = vrot.lane.b32.xlu0 %v334, 48
    %v886 = vpop.permute.xlu0 %885
    %887 = vrot.lane.b32.xlu0 %v335, 48
    %v888 = vpop.permute.xlu0 %887
    %v889 = vsel %vm352, %v874, 0
    %v891 = vsel %vm352, %v876, 0
    %v893 = vsel %vm352, %v878, 0
    %v895 = vsel %vm352, %v880, 0
    %v897 = vsel %vm352, %v882, 0
    %v899 = vsel %vm352, %v884, 0
    %v901 = vsel %vm352, %v886, 0
    %v903 = vsel %vm352, %v888, 0
    %905 = vmatprep.subr.mxu0 0.0
    %906 = vmatpush1.xpose.msra.mxu0 %v897
    %907 = vmatprep.subr.mxu0 0.0
    %908 = vmatpush1.xpose.msra.mxu0 %v899
    %909 = vmatprep.subr.mxu0 0.0
    %910 = vmatpush1.xpose.msra.mxu0 %v901
    %911 = vmatprep.subr.mxu0 0.0
    %912 = vmatpush1.xpose.msra.mxu0 %v903
    %913 = vmatprep.subr.mxu0 0.0
    %914 = vmatpush1.xpose.msra.mxu0 0.0
    %915 = vmatprep.subr.mxu0 0.0
    %916 = vmatpush1.xpose.msra.mxu0 0.0
    %917 = vmatprep.subr.mxu0 0.0
    %918 = vmatpush1.xpose.msra.mxu0 0.0
    %919 = vmatprep.subr.mxu0 0.0
    %920 = vmatpush1.xpose.msra.mxu0 0.0
    %921 = vmatprep.subr.mxu0 0.0
    %922 = vmatpush1.xpose.msra.mxu0 0.0
    %923 = vmatprep.subr.mxu0 0.0
    %924 = vmatpush1.xpose.msra.mxu0 0.0
    %925 = vmatprep.subr.mxu0 0.0
    %926 = vmatpush1.xpose.msra.mxu0 0.0
    %927 = vmatprep.subr.mxu0 0.0
    %928 = vmatpush1.xpose.msra.mxu0 0.0
    %929 = vmatprep.subr.mxu0 0.0
    %930 = vmatpush1.xpose.msra.mxu0 0.0
    %931 = vmatprep.subr.mxu0 0.0
    %932 = vmatpush1.xpose.msra.mxu0 0.0
    %933 = vmatprep.subr.mxu0 0.0
    %934 = vmatpush1.xpose.msra.mxu0 0.0
    %935 = vmatprep.subr.mxu0 0.0
    %936 = vmatpush1.xpose.msra.mxu0 0.0
    %937 = vmatprep.subr.mxu0 0.0
    %938 = vmatpush1.xpose.msra.mxu0 0.0
    %939 = vmatprep.subr.mxu0 0.0
    %940 = vmatpush1.xpose.msra.mxu0 0.0
    %941 = vmatprep.subr.mxu0 0.0
    %942 = vmatpush1.xpose.msra.mxu0 0.0
    %943 = vmatprep.subr.mxu0 0.0
    %944 = vmatpush1.xpose.msra.mxu0 0.0
    %945 = vmatprep.subr.mxu0 0.0
    %946 = vmatpush1.xpose.msra.mxu0 0.0
    %947 = vmatprep.subr.mxu0 0.0
    %948 = vmatpush1.xpose.msra.mxu0 0.0
    %949 = vmatprep.subr.mxu0 0.0
    %950 = vmatpush1.xpose.msra.mxu0 0.0
    %951 = vmatprep.subr.mxu0 0.0
    %952 = vmatpush1.xpose.msra.mxu0 0.0
    %953 = vmatprep.subr.mxu0 0.0
    %954 = vmatpush1.xpose.msra.mxu0 0.0
    %955 = vmatprep.subr.mxu0 0.0
    %956 = vmatpush1.xpose.msra.mxu0 0.0
    %957 = vmatprep.subr.mxu0 0.0
    %958 = vmatpush1.xpose.msra.mxu0 0.0
    %959 = vmatprep.subr.mxu0 0.0
    %960 = vmatpush1.xpose.msra.mxu0 0.0
    %961 = vmatprep.subr.mxu0 0.0
    %962 = vmatpush1.xpose.msra.mxu0 0.0
    %963 = vmatprep.subr.mxu0 0.0
    %964 = vmatpush1.xpose.msra.mxu0 0.0
    %965 = vmatprep.subr.mxu0 0.0
    %966 = vmatpush1.xpose.msra.mxu0 0.0
    %967 = vmatprep.subr.mxu0 0.0
    %968 = vmatpush1.xpose.msra.mxu0 0.0
    %969 = vmatprep.mubr.f32.mxu0 0.0
    %970 = vmatmul.mubr.f32.gmra.mrb[0].mxu0 %v889
    %v971 = vpop.f32.mrb[0].mxu0
    %v972 = vadd.f32 %v336, %v971
    %v973 = vpop.f32.mrb[0].mxu0
    %974 = vmatprep.mubr.f32.mxu0 0.0
    %975 = vmatmul.mubr.f32.gmra.mrb[0].mxu0 %v891
    %v976 = vpop.f32.mrb[0].mxu0
    %v977 = vadd.f32 %v337, %v976
    %v978 = vpop.f32.mrb[0].mxu0
    %979 = vmatprep.mubr.f32.mxu0 0.0
    %980 = vmatmul.mubr.f32.gmra.mrb[0].mxu0 %v893
    %v981 = vpop.f32.mrb[0].mxu0
    %v982 = vadd.f32 %v338, %v981
    %v983 = vpop.f32.mrb[0].mxu0
    %984 = vmatprep.mubr.f32.mxu0 0.0
    %985 = vmatmul.mubr.f32.gmra.mrb[0].mxu0 %v895
    %v986 = vpop.f32.mrb[0].mxu0
    %v987 = vadd.f32 %v339, %v986
    %v988 = vpop.f32.mrb[0].mxu0
    %989 = vdwg.mxu0
    %v990 = vsel %vm54, %v972, -inf
    %991 = vmax.xlane.f32.xlu0 %v990
    %v992 = vpop.xlane.xlu0 %991
    %v993 = vsel %vm54, %v977, -inf
    %994 = vmax.xlane.f32.xlu0 %v993
    %v995 = vpop.xlane.xlu0 %994
    %v996 = vsel %vm54, %v982, -inf
    %997 = vmax.xlane.f32.xlu0 %v996
    %v998 = vpop.xlane.xlu0 %997
    %v999 = vsel %vm54, %v987, -inf
    %1000 = vmax.xlane.f32.xlu0 %v999
    %v1001 = vpop.xlane.xlu0 %1000
    %v1002 = vsub.f32 %v972, %v992
    %v1003 = vsub.f32 %v977, %v995
    %v1004 = vsub.f32 %v982, %v998
    %v1005 = vsub.f32 %v987, %v1001
    %v1006 = vmul.f32 %v1002, 1.442695
    %v1007 = vpow.pop %v1006
    %v1008 = vmul.f32 %v1003, 1.442695
    %v1009 = vpow.pop %v1008
    %v1010 = vmul.f32 %v1004, 1.442695
    %v1011 = vpow.pop %v1010
    %v1012 = vmul.f32 %v1005, 1.442695
    %v1013 = vpow.pop %v1012
    %v1014 = vsel %vm54, %v1007, 0.0
    %1015 = vadd.xlane.f32.xlu0 %v1014
    %v1016 = vpop.xlane.xlu0 %1015
    %v1017 = vsel %vm54, %v1009, 0.0
    %1018 = vadd.xlane.f32.xlu0 %v1017
    %v1019 = vpop.xlane.xlu0 %1018
    %v1020 = vsel %vm54, %v1011, 0.0
    %1021 = vadd.xlane.f32.xlu0 %v1020
    %v1022 = vpop.xlane.xlu0 %1021
    %v1023 = vsel %vm54, %v1013, 0.0
    %1024 = vadd.xlane.f32.xlu0 %v1023
    %v1025 = vpop.xlane.xlu0 %1024
    %v1026 = vrcp.pop %v1016
    %v1027 = vmul.f32 %v1007, %v1026
    %v1028 = vrcp.pop %v1019
    %v1029 = vmul.f32 %v1009, %v1028
    %v1030 = vrcp.pop %v1022
    %v1031 = vmul.f32 %v1011, %v1030
    %v1032 = vrcp.pop %v1025
    %v1033 = vmul.f32 %v1013, %v1032
    %1034 = vrot.lane.b32.xlu0 %v196, 112
    %v1035 = vpop.permute.xlu0 %1034
    %1036 = vrot.lane.b32.xlu0 %v202, 112
    %v1037 = vpop.permute.xlu0 %1036
    %1038 = vrot.lane.b32.xlu0 %v208, 112
    %v1039 = vpop.permute.xlu0 %1038
    %1040 = vrot.lane.b32.xlu0 %v214, 112
    %v1041 = vpop.permute.xlu0 %1040
    %v1047 = vsel %vm54, %v1027, 0
    %v1050 = vsel %vm54, %v1029, 0
    %v1053 = vsel %vm54, %v1031, 0
    %v1056 = vsel %vm54, %v1033, 0
    %1058 = vmatprep.subr.mxu0 0.0
    %1059 = vmatpush1.msra.mxu0 %v1035
    %1060 = vmatprep.subr.mxu0 0.0
    %1061 = vmatpush1.msra.mxu0 %v1037
    %1062 = vmatprep.subr.mxu0 0.0
    %1063 = vmatpush1.msra.mxu0 %v1039
    %1064 = vmatprep.subr.mxu0 0.0
    %1065 = vmatpush1.msra.mxu0 %v1041
    %1066 = vmatprep.subr.mxu0 0.0
    %1067 = vmatpush1.msra.mxu0 0.0
    %1068 = vmatprep.subr.mxu0 0.0
    %1069 = vmatpush1.msra.mxu0 0.0
    %1070 = vmatprep.subr.mxu0 0.0
    %1071 = vmatpush1.msra.mxu0 0.0
    %1072 = vmatprep.subr.mxu0 0.0
    %1073 = vmatpush1.msra.mxu0 0.0
    %1074 = vmatprep.subr.mxu0 0.0
    %1075 = vmatpush1.msra.mxu0 0.0
    %1076 = vmatprep.subr.mxu0 0.0
    %1077 = vmatpush1.msra.mxu0 0.0
    %1078 = vmatprep.subr.mxu0 0.0
    %1079 = vmatpush1.msra.mxu0 0.0
    %1080 = vmatprep.subr.mxu0 0.0
    %1081 = vmatpush1.msra.mxu0 0.0
    %1082 = vmatprep.subr.mxu0 0.0
    %1083 = vmatpush1.msra.mxu0 0.0
    %1084 = vmatprep.subr.mxu0 0.0
    %1085 = vmatpush1.msra.mxu0 0.0
    %1086 = vmatprep.subr.mxu0 0.0
    %1087 = vmatpush1.msra.mxu0 0.0
    %1088 = vmatprep.subr.mxu0 0.0
    %1089 = vmatpush1.msra.mxu0 0.0
    %1090 = vmatprep.subr.mxu0 0.0
    %1091 = vmatpush1.msra.mxu0 0.0
    %1092 = vmatprep.subr.mxu0 0.0
    %1093 = vmatpush1.msra.mxu0 0.0
    %1094 = vmatprep.subr.mxu0 0.0
    %1095 = vmatpush1.msra.mxu0 0.0
    %1096 = vmatprep.subr.mxu0 0.0
    %1097 = vmatpush1.msra.mxu0 0.0
    %1098 = vmatprep.subr.mxu0 0.0
    %1099 = vmatpush1.msra.mxu0 0.0
    %1100 = vmatprep.subr.mxu0 0.0
    %1101 = vmatpush1.msra.mxu0 0.0
    %1102 = vmatprep.subr.mxu0 0.0
    %1103 = vmatpush1.msra.mxu0 0.0
    %1104 = vmatprep.subr.mxu0 0.0
    %1105 = vmatpush1.msra.mxu0 0.0
    %1106 = vmatprep.subr.mxu0 0.0
    %1107 = vmatpush1.msra.mxu0 0.0
    %1108 = vmatprep.subr.mxu0 0.0
    %1109 = vmatpush1.msra.mxu0 0.0
    %1110 = vmatprep.subr.mxu0 0.0
    %1111 = vmatpush1.msra.mxu0 0.0
    %1112 = vmatprep.subr.mxu0 0.0
    %1113 = vmatpush1.msra.mxu0 0.0
    %1114 = vmatprep.subr.mxu0 0.0
    %1115 = vmatpush1.msra.mxu0 0.0
    %1116 = vmatprep.subr.mxu0 0.0
    %1117 = vmatpush1.msra.mxu0 0.0
    %1118 = vmatprep.subr.mxu0 0.0
    %1119 = vmatpush1.msra.mxu0 0.0
    %1120 = vmatprep.subr.mxu0 0.0
    %1121 = vmatpush1.msra.mxu0 0.0
    %1122 = vmatprep.mubr.f32.mxu0 0.0
    %1123 = vmatmul.mubr.f32.gmra.mrb[0].mxu0 %v1047
    %v1124 = vpop.f32.mrb[0].mxu0
    %v1125 = vadd.f32 0.0, %v1124
    %v1126 = vpop.f32.mrb[0].mxu0
    %1127 = vmatprep.mubr.f32.mxu0 0.0
    %1128 = vmatmul.mubr.f32.gmra.mrb[0].mxu0 %v1050
    %v1129 = vpop.f32.mrb[0].mxu0
    %v1130 = vadd.f32 0.0, %v1129
    %v1131 = vpop.f32.mrb[0].mxu0
    %1132 = vmatprep.mubr.f32.mxu0 0.0
    %1133 = vmatmul.mubr.f32.gmra.mrb[0].mxu0 %v1053
    %v1134 = vpop.f32.mrb[0].mxu0
    %v1135 = vadd.f32 0.0, %v1134
    %v1136 = vpop.f32.mrb[0].mxu0
    %1137 = vmatprep.mubr.f32.mxu0 0.0
    %1138 = vmatmul.mubr.f32.gmra.mrb[0].mxu0 %v1056
    %v1139 = vpop.f32.mrb[0].mxu0
    %v1140 = vadd.f32 0.0, %v1139
    %v1141 = vpop.f32.mrb[0].mxu0
    %1142 = vdwg.mxu0
    %1143 = vrot.lane.b32.xlu0 %v264, 104
    %v1144 = vpop.permute.xlu0 %1143
    %1145 = vrot.lane.b32.xlu0 %v265, 104
    %v1146 = vpop.permute.xlu0 %1145
    %1147 = vrot.lane.b32.xlu0 %v266, 104
    %v1148 = vpop.permute.xlu0 %1147
    %1149 = vrot.lane.b32.xlu0 %v267, 104
    %v1150 = vpop.permute.xlu0 %1149
    %1151 = vrot.lane.b32.xlu0 %v332, 40
    %v1152 = vpop.permute.xlu0 %1151
    %1153 = vrot.lane.b32.xlu0 %v333, 40
    %v1154 = vpop.permute.xlu0 %1153
    %1155 = vrot.lane.b32.xlu0 %v334, 40
    %v1156 = vpop.permute.xlu0 %1155
    %1157 = vrot.lane.b32.xlu0 %v335, 40
    %v1158 = vpop.permute.xlu0 %1157
    %v1159 = vsel %vm352, %v1144, 0
    %v1161 = vsel %vm352, %v1146, 0
    %v1163 = vsel %vm352, %v1148, 0
    %v1165 = vsel %vm352, %v1150, 0
    %v1167 = vsel %vm352, %v1152, 0
    %v1169 = vsel %vm352, %v1154, 0
    %v1171 = vsel %vm352, %v1156, 0
    %v1173 = vsel %vm352, %v1158, 0
    %1175 = vmatprep.subr.mxu0 0.0
    %1176 = vmatpush1.xpose.msra.mxu0 %v1167
    %1177 = vmatprep.subr.mxu0 0.0
    %1178 = vmatpush1.xpose.msra.mxu0 %v1169
    %1179 = vmatprep.subr.mxu0 0.0
    %1180 = vmatpush1.xpose.msra.mxu0 %v1171
    %1181 = vmatprep.subr.mxu0 0.0
    %1182 = vmatpush1.xpose.msra.mxu0 %v1173
    %1183 = vmatprep.subr.mxu0 0.0
    %1184 = vmatpush1.xpose.msra.mxu0 0.0
    %1185 = vmatprep.subr.mxu0 0.0
    %1186 = vmatpush1.xpose.msra.mxu0 0.0
    %1187 = vmatprep.subr.mxu0 0.0
    %1188 = vmatpush1.xpose.msra.mxu0 0.0
    %1189 = vmatprep.subr.mxu0 0.0
    %1190 = vmatpush1.xpose.msra.mxu0 0.0
    %1191 = vmatprep.subr.mxu0 0.0
    %1192 = vmatpush1.xpose.msra.mxu0 0.0
    %1193 = vmatprep.subr.mxu0 0.0
    %1194 = vmatpush1.xpose.msra.mxu0 0.0
    %1195 = vmatprep.subr.mxu0 0.0
    %1196 = vmatpush1.xpose.msra.mxu0 0.0
    %1197 = vmatprep.subr.mxu0 0.0
    %1198 = vmatpush1.xpose.msra.mxu0 0.0
    %1199 = vmatprep.subr.mxu0 0.0
    %1200 = vmatpush1.xpose.msra.mxu0 0.0
    %1201 = vmatprep.subr.mxu0 0.0
    %1202 = vmatpush1.xpose.msra.mxu0 0.0
    %1203 = vmatprep.subr.mxu0 0.0
    %1204 = vmatpush1.xpose.msra.mxu0 0.0
    %1205 = vmatprep.subr.mxu0 0.0
    %1206 = vmatpush1.xpose.msra.mxu0 0.0
    %1207 = vmatprep.subr.mxu0 0.0
    %1208 = vmatpush1.xpose.msra.mxu0 0.0
    %1209 = vmatprep.subr.mxu0 0.0
    %1210 = vmatpush1.xpose.msra.mxu0 0.0
    %1211 = vmatprep.subr.mxu0 0.0
    %1212 = vmatpush1.xpose.msra.mxu0 0.0
    %1213 = vmatprep.subr.mxu0 0.0
    %1214 = vmatpush1.xpose.msra.mxu0 0.0
    %1215 = vmatprep.subr.mxu0 0.0
    %1216 = vmatpush1.xpose.msra.mxu0 0.0
    %1217 = vmatprep.subr.mxu0 0.0
    %1218 = vmatpush1.xpose.msra.mxu0 0.0
    %1219 = vmatprep.subr.mxu0 0.0
    %1220 = vmatpush1.xpose.msra.mxu0 0.0
    %1221 = vmatprep.subr.mxu0 0.0
    %1222 = vmatpush1.xpose.msra.mxu0 0.0
    %1223 = vmatprep.subr.mxu0 0.0
    %1224 = vmatpush1.xpose.msra.mxu0 0.0
    %1225 = vmatprep.subr.mxu0 0.0
    %1226 = vmatpush1.xpose.msra.mxu0 0.0
    %1227 = vmatprep.subr.mxu0 0.0
    %1228 = vmatpush1.xpose.msra.mxu0 0.0
    %1229 = vmatprep.subr.mxu0 0.0
    %1230 = vmatpush1.xpose.msra.mxu0 0.0
    %1231 = vmatprep.subr.mxu0 0.0
    %1232 = vmatpush1.xpose.msra.mxu0 0.0
    %1233 = vmatprep.subr.mxu0 0.0
    %1234 = vmatpush1.xpose.msra.mxu0 0.0
    %1235 = vmatprep.subr.mxu0 0.0
    %1236 = vmatpush1.xpose.msra.mxu0 0.0
    %1237 = vmatprep.subr.mxu0 0.0
    %1238 = vmatpush1.xpose.msra.mxu0 0.0
    %1239 = vmatprep.mubr.f32.mxu0 0.0
    %1240 = vmatmul.mubr.f32.gmra.mrb[0].mxu0 %v1159
    %v1241 = vpop.f32.mrb[0].mxu0
    %v1242 = vadd.f32 %v336, %v1241
    %v1243 = vpop.f32.mrb[0].mxu0
    %1244 = vmatprep.mubr.f32.mxu0 0.0
    %1245 = vmatmul.mubr.f32.gmra.mrb[0].mxu0 %v1161
    %v1246 = vpop.f32.mrb[0].mxu0
    %v1247 = vadd.f32 %v337, %v1246
    %v1248 = vpop.f32.mrb[0].mxu0
    %1249 = vmatprep.mubr.f32.mxu0 0.0
    %1250 = vmatmul.mubr.f32.gmra.mrb[0].mxu0 %v1163
    %v1251 = vpop.f32.mrb[0].mxu0
    %v1252 = vadd.f32 %v338, %v1251
    %v1253 = vpop.f32.mrb[0].mxu0
    %1254 = vmatprep.mubr.f32.mxu0 0.0
    %1255 = vmatmul.mubr.f32.gmra.mrb[0].mxu0 %v1165
    %v1256 = vpop.f32.mrb[0].mxu0
    %v1257 = vadd.f32 %v339, %v1256
    %v1258 = vpop.f32.mrb[0].mxu0
    %1259 = vdwg.mxu0
    %v1260 = vsel %vm54, %v1242, -inf
    %1261 = vmax.xlane.f32.xlu0 %v1260
    %v1262 = vpop.xlane.xlu0 %1261
    %v1263 = vsel %vm54, %v1247, -inf
    %1264 = vmax.xlane.f32.xlu0 %v1263
    %v1265 = vpop.xlane.xlu0 %1264
    %v1266 = vsel %vm54, %v1252, -inf
    %1267 = vmax.xlane.f32.xlu0 %v1266
    %v1268 = vpop.xlane.xlu0 %1267
    %v1269 = vsel %vm54, %v1257, -inf
    %1270 = vmax.xlane.f32.xlu0 %v1269
    %v1271 = vpop.xlane.xlu0 %1270
    %v1272 = vsub.f32 %v1242, %v1262
    %v1273 = vsub.f32 %v1247, %v1265
    %v1274 = vsub.f32 %v1252, %v1268
    %v1275 = vsub.f32 %v1257, %v1271
    %v1276 = vmul.f32 %v1272, 1.442695
    %v1277 = vpow.pop %v1276
    %v1278 = vmul.f32 %v1273, 1.442695
    %v1279 = vpow.pop %v1278
    %v1280 = vmul.f32 %v1274, 1.442695
    %v1281 = vpow.pop %v1280
    %v1282 = vmul.f32 %v1275, 1.442695
    %v1283 = vpow.pop %v1282
    %v1284 = vsel %vm54, %v1277, 0.0
    %1285 = vadd.xlane.f32.xlu0 %v1284
    %v1286 = vpop.xlane.xlu0 %1285
    %v1287 = vsel %vm54, %v1279, 0.0
    %1288 = vadd.xlane.f32.xlu0 %v1287
    %v1289 = vpop.xlane.xlu0 %1288
    %v1290 = vsel %vm54, %v1281, 0.0
    %1291 = vadd.xlane.f32.xlu0 %v1290
    %v1292 = vpop.xlane.xlu0 %1291
    %v1293 = vsel %vm54, %v1283, 0.0
    %1294 = vadd.xlane.f32.xlu0 %v1293
    %v1295 = vpop.xlane.xlu0 %1294
    %v1296 = vrcp.pop %v1286
    %v1297 = vmul.f32 %v1277, %v1296
    %v1298 = vrcp.pop %v1289
    %v1299 = vmul.f32 %v1279, %v1298
    %v1300 = vrcp.pop %v1292
    %v1301 = vmul.f32 %v1281, %v1300
    %v1302 = vrcp.pop %v1295
    %v1303 = vmul.f32 %v1283, %v1302
    %1304 = vrot.lane.b32.xlu0 %v196, 104
    %v1305 = vpop.permute.xlu0 %1304
    %1306 = vrot.lane.b32.xlu0 %v202, 104
    %v1307 = vpop.permute.xlu0 %1306
    %1308 = vrot.lane.b32.xlu0 %v208, 104
    %v1309 = vpop.permute.xlu0 %1308
    %1310 = vrot.lane.b32.xlu0 %v214, 104
    %v1311 = vpop.permute.xlu0 %1310
    %v1317 = vsel %vm54, %v1297, 0
    %v1320 = vsel %vm54, %v1299, 0
    %v1323 = vsel %vm54, %v1301, 0
    %v1326 = vsel %vm54, %v1303, 0
    %1328 = vmatprep.subr.mxu0 0.0
    %1329 = vmatpush1.msra.mxu0 %v1305
    %1330 = vmatprep.subr.mxu0 0.0
    %1331 = vmatpush1.msra.mxu0 %v1307
    %1332 = vmatprep.subr.mxu0 0.0
    %1333 = vmatpush1.msra.mxu0 %v1309
    %1334 = vmatprep.subr.mxu0 0.0
    %1335 = vmatpush1.msra.mxu0 %v1311
    %1336 = vmatprep.subr.mxu0 0.0
    %1337 = vmatpush1.msra.mxu0 0.0
    %1338 = vmatprep.subr.mxu0 0.0
    %1339 = vmatpush1.msra.mxu0 0.0
    %1340 = vmatprep.subr.mxu0 0.0
    %1341 = vmatpush1.msra.mxu0 0.0
    %1342 = vmatprep.subr.mxu0 0.0
    %1343 = vmatpush1.msra.mxu0 0.0
    %1344 = vmatprep.subr.mxu0 0.0
    %1345 = vmatpush1.msra.mxu0 0.0
    %1346 = vmatprep.subr.mxu0 0.0
    %1347 = vmatpush1.msra.mxu0 0.0
    %1348 = vmatprep.subr.mxu0 0.0
    %1349 = vmatpush1.msra.mxu0 0.0
    %1350 = vmatprep.subr.mxu0 0.0
    %1351 = vmatpush1.msra.mxu0 0.0
    %1352 = vmatprep.subr.mxu0 0.0
    %1353 = vmatpush1.msra.mxu0 0.0
    %1354 = vmatprep.subr.mxu0 0.0
    %1355 = vmatpush1.msra.mxu0 0.0
    %1356 = vmatprep.subr.mxu0 0.0
    %1357 = vmatpush1.msra.mxu0 0.0
    %1358 = vmatprep.subr.mxu0 0.0
    %1359 = vmatpush1.msra.mxu0 0.0
    %1360 = vmatprep.subr.mxu0 0.0
    %1361 = vmatpush1.msra.mxu0 0.0
    %1362 = vmatprep.subr.mxu0 0.0
    %1363 = vmatpush1.msra.mxu0 0.0
    %1364 = vmatprep.subr.mxu0 0.0
    %1365 = vmatpush1.msra.mxu0 0.0
    %1366 = vmatprep.subr.mxu0 0.0
    %1367 = vmatpush1.msra.mxu0 0.0
    %1368 = vmatprep.subr.mxu0 0.0
    %1369 = vmatpush1.msra.mxu0 0.0
    %1370 = vmatprep.subr.mxu0 0.0
    %1371 = vmatpush1.msra.mxu0 0.0
    %1372 = vmatprep.subr.mxu0 0.0
    %1373 = vmatpush1.msra.mxu0 0.0
    %1374 = vmatprep.subr.mxu0 0.0
    %1375 = vmatpush1.msra.mxu0 0.0
    %1376 = vmatprep.subr.mxu0 0.0
    %1377 = vmatpush1.msra.mxu0 0.0
    %1378 = vmatprep.subr.mxu0 0.0
    %1379 = vmatpush1.msra.mxu0 0.0
    %1380 = vmatprep.subr.mxu0 0.0
    %1381 = vmatpush1.msra.mxu0 0.0
    %1382 = vmatprep.subr.mxu0 0.0
    %1383 = vmatpush1.msra.mxu0 0.0
    %1384 = vmatprep.subr.mxu0 0.0
    %1385 = vmatpush1.msra.mxu0 0.0
    %1386 = vmatprep.subr.mxu0 0.0
    %1387 = vmatpush1.msra.mxu0 0.0
    %1388 = vmatprep.subr.mxu0 0.0
    %1389 = vmatpush1.msra.mxu0 0.0
    %1390 = vmatprep.subr.mxu0 0.0
    %1391 = vmatpush1.msra.mxu0 0.0
    %1392 = vmatprep.mubr.f32.mxu0 0.0
    %1393 = vmatmul.mubr.f32.gmra.mrb[0].mxu0 %v1317
    %v1394 = vpop.f32.mrb[0].mxu0
    %v1395 = vadd.f32 0.0, %v1394
    %v1396 = vpop.f32.mrb[0].mxu0
    %1397 = vmatprep.mubr.f32.mxu0 0.0
    %1398 = vmatmul.mubr.f32.gmra.mrb[0].mxu0 %v1320
    %v1399 = vpop.f32.mrb[0].mxu0
    %v1400 = vadd.f32 0.0, %v1399
    %v1401 = vpop.f32.mrb[0].mxu0
    %1402 = vmatprep.mubr.f32.mxu0 0.0
    %1403 = vmatmul.mubr.f32.gmra.mrb[0].mxu0 %v1323
    %v1404 = vpop.f32.mrb[0].mxu0
    %v1405 = vadd.f32 0.0, %v1404
    %v1406 = vpop.f32.mrb[0].mxu0
    %1407 = vmatprep.mubr.f32.mxu0 0.0
    %1408 = vmatmul.mubr.f32.gmra.mrb[0].mxu0 %v1326
    %v1409 = vpop.f32.mrb[0].mxu0
    %v1410 = vadd.f32 0.0, %v1409
    %v1411 = vpop.f32.mrb[0].mxu0
    %1412 = vdwg.mxu0
    %1417 = vrot.lane.b32.xlu0 %v855, 8
    %v1418 = vpop.permute.xlu0 %1417
    %1419 = vrot.lane.b32.xlu0 %v860, 8
    %v1420 = vpop.permute.xlu0 %1419
    %1421 = vrot.lane.b32.xlu0 %v865, 8
    %v1422 = vpop.permute.xlu0 %1421
    %1423 = vrot.lane.b32.xlu0 %v870, 8
    %v1424 = vpop.permute.xlu0 %1423
    %1433 = vrot.lane.b32.xlu0 %v1125, 16
    %v1434 = vpop.permute.xlu0 %1433
    %1435 = vrot.lane.b32.xlu0 %v1130, 16
    %v1436 = vpop.permute.xlu0 %1435
    %1437 = vrot.lane.b32.xlu0 %v1135, 16
    %v1438 = vpop.permute.xlu0 %1437
    %1439 = vrot.lane.b32.xlu0 %v1140, 16
    %v1440 = vpop.permute.xlu0 %1439
    %1449 = vrot.lane.b32.xlu0 %v1395, 24
    %v1450 = vpop.permute.xlu0 %1449
    %1451 = vrot.lane.b32.xlu0 %v1400, 24
    %v1452 = vpop.permute.xlu0 %1451
    %1453 = vrot.lane.b32.xlu0 %v1405, 24
    %v1454 = vpop.permute.xlu0 %1453
    %1455 = vrot.lane.b32.xlu0 %v1410, 24
    %v1456 = vpop.permute.xlu0 %1455
    %v1461 = vsel %vm352, %v581, %v1418
    %v1462 = vsel %vm352, %v586, %v1420
    %v1463 = vsel %vm352, %v591, %v1422
    %v1464 = vsel %vm352, %v596, %v1424
    %vm1465 = vcmask 130048
    %v1466 = vsel %vm1465, %v1461, %v1434
    %v1467 = vsel %vm1465, %v1462, %v1436
    %v1468 = vsel %vm1465, %v1463, %v1438
    %v1469 = vsel %vm1465, %v1464, %v1440
    %vm1470 = vcmask 195584
    %v1471 = vsel %vm1470, %v1466, %v1450
    %v1472 = vsel %vm1470, %v1467, %v1452
    %v1473 = vsel %vm1470, %v1468, %v1454
    %v1474 = vsel %vm1470, %v1469, %v1456
    %v1475 = vld [vmem:[%s2] sm:$0xff]
    %v1476 = vld [vmem:[%s2 + $0x8] sm:$0xff]
    %v1477 = vld [vmem:[%s2 + $0x10] sm:$0xff]
    %v1478 = vld [vmem:[%s2 + $0x18] sm:$0xff]
    %v1480 = vsel %vm54, %v1471, 0
    %v1483 = vsel %vm54, %v1472, 0
    %v1486 = vsel %vm54, %v1473, 0
    %v1489 = vsel %vm54, %v1474, 0
    %v1492 = vsel %vm54, %v1475, 0
    %v1495 = vsel %vm54, %v1476, 0
    %v1498 = vsel %vm54, %v1477, 0
    %v1501 = vsel %vm54, %v1478, 0
    %1503 = vmatprep.subr.mxu0 0.0
    %1504 = vmatpush1.xpose.msra.mxu0 %v1492
    %1505 = vmatprep.subr.mxu0 0.0
    %1506 = vmatpush1.xpose.msra.mxu0 %v1495
    %1507 = vmatprep.subr.mxu0 0.0
    %1508 = vmatpush1.xpose.msra.mxu0 %v1498
    %1509 = vmatprep.subr.mxu0 0.0
    %1510 = vmatpush1.xpose.msra.mxu0 %v1501
    %1511 = vmatprep.subr.mxu0 0.0
    %1512 = vmatpush1.xpose.msra.mxu0 0.0
    %1513 = vmatprep.subr.mxu0 0.0
    %1514 = vmatpush1.xpose.msra.mxu0 0.0
    %1515 = vmatprep.subr.mxu0 0.0
    %1516 = vmatpush1.xpose.msra.mxu0 0.0
    %1517 = vmatprep.subr.mxu0 0.0
    %1518 = vmatpush1.xpose.msra.mxu0 0.0
    %1519 = vmatprep.subr.mxu0 0.0
    %1520 = vmatpush1.xpose.msra.mxu0 0.0
    %1521 = vmatprep.subr.mxu0 0.0
    %1522 = vmatpush1.xpose.msra.mxu0 0.0
    %1523 = vmatprep.subr.mxu0 0.0
    %1524 = vmatpush1.xpose.msra.mxu0 0.0
    %1525 = vmatprep.subr.mxu0 0.0
    %1526 = vmatpush1.xpose.msra.mxu0 0.0
    %1527 = vmatprep.subr.mxu0 0.0
    %1528 = vmatpush1.xpose.msra.mxu0 0.0
    %1529 = vmatprep.subr.mxu0 0.0
    %1530 = vmatpush1.xpose.msra.mxu0 0.0
    %1531 = vmatprep.subr.mxu0 0.0
    %1532 = vmatpush1.xpose.msra.mxu0 0.0
    %1533 = vmatprep.subr.mxu0 0.0
    %1534 = vmatpush1.xpose.msra.mxu0 0.0
    %1535 = vmatprep.subr.mxu0 0.0
    %1536 = vmatpush1.xpose.msra.mxu0 0.0
    %1537 = vmatprep.subr.mxu0 0.0
    %1538 = vmatpush1.xpose.msra.mxu0 0.0
    %1539 = vmatprep.subr.mxu0 0.0
    %1540 = vmatpush1.xpose.msra.mxu0 0.0
    %1541 = vmatprep.subr.mxu0 0.0
    %1542 = vmatpush1.xpose.msra.mxu0 0.0
    %1543 = vmatprep.subr.mxu0 0.0
    %1544 = vmatpush1.xpose.msra.mxu0 0.0
    %1545 = vmatprep.subr.mxu0 0.0
    %1546 = vmatpush1.xpose.msra.mxu0 0.0
    %1547 = vmatprep.subr.mxu0 0.0
    %1548 = vmatpush1.xpose.msra.mxu0 0.0
    %1549 = vmatprep.subr.mxu0 0.0
    %1550 = vmatpush1.xpose.msra.mxu0 0.0
    %1551 = vmatprep.subr.mxu0 0.0
    %1552 = vmatpush1.xpose.msra.mxu0 0.0
    %1553 = vmatprep.subr.mxu0 0.0
    %1554 = vmatpush1.xpose.msra.mxu0 0.0
    %1555 = vmatprep.subr.mxu0 0.0
    %1556 = vmatpush1.xpose.msra.mxu0 0.0
    %1557 = vmatprep.subr.mxu0 0.0
    %1558 = vmatpush1.xpose.msra.mxu0 0.0
    %1559 = vmatprep.subr.mxu0 0.0
    %1560 = vmatpush1.xpose.msra.mxu0 0.0
    %1561 = vmatprep.subr.mxu0 0.0
    %1562 = vmatpush1.xpose.msra.mxu0 0.0
    %1563 = vmatprep.subr.mxu0 0.0
    %1564 = vmatpush1.xpose.msra.mxu0 0.0
    %1565 = vmatprep.subr.mxu0 0.0
    %1566 = vmatpush1.xpose.msra.mxu0 0.0
    %1567 = vmatprep.mubr.f32.mxu0 0.0
    %1568 = vmatmul.mubr.f32.gmra.mrb[0].mxu0 %v1480
    %v1569 = vpop.f32.mrb[0].mxu0
    %v1570 = vadd.f32 0.0, %v1569
    %v1571 = vpop.f32.mrb[0].mxu0
    %1572 = vmatprep.mubr.f32.mxu0 0.0
    %1573 = vmatmul.mubr.f32.gmra.mrb[0].mxu0 %v1483
    %v1574 = vpop.f32.mrb[0].mxu0
    %v1575 = vadd.f32 0.0, %v1574
    %v1576 = vpop.f32.mrb[0].mxu0
    %1577 = vmatprep.mubr.f32.mxu0 0.0
    %1578 = vmatmul.mubr.f32.gmra.mrb[0].mxu0 %v1486
    %v1579 = vpop.f32.mrb[0].mxu0
    %v1580 = vadd.f32 0.0, %v1579
    %v1581 = vpop.f32.mrb[0].mxu0
    %1582 = vmatprep.mubr.f32.mxu0 0.0
    %1583 = vmatmul.mubr.f32.gmra.mrb[0].mxu0 %v1489
    %v1584 = vpop.f32.mrb[0].mxu0
    %v1585 = vadd.f32 0.0, %v1584
    %v1586 = vpop.f32.mrb[0].mxu0
    %1587 = vdwg.mxu0
    %1588 = vst.msk [vmem:[#allocation2] sm:$0xff] %vm54, %v1570
    %1589 = vst.msk [vmem:[#allocation2 + $0x8] sm:$0xff] %vm54, %v1575
    %1590 = vst.msk [vmem:[#allocation2 + $0x10] sm:$0xff] %vm54, %v1580
    %1591 = vst.msk [vmem:[#allocation2 + $0x18] sm:$0xff] %vm54, %v1585
    // Predicated region
    $region34: #{tpu_custom_call.1} parent=1 // pred_check
      _
    $region35: #{tpu_custom_call.1} parent=1 // pred_check_branch
      %1593 = sbr.rel (0) target = $region37
    $region36: #{tpu_custom_call.1} parent=1 // pred_region
      %s1595 = ssub.s32 512, 512
      %1596 = vsyncadd [#allocation3], %s1595
      %s1597 = sshll.u32 [#allocation2], 4
      %s1598 = int_to_ptr.vmem [resolvable:$true] %s1597
      %1603 = dma.vmem_to_hbm [thread:$0]  %s1598, 512, %s8, [#allocation3], 128, 128, 8
    $region37: #{tpu_custom_call.1} parent=1 // pred_fallthru
      _
    // Predicated region
    $region38: #{tpu_custom_call.1} parent=1 // pred_check
      _
    $region39: #{tpu_custom_call.1} parent=1 // pred_check_branch
      %1605 = sbr.rel (0) target = $region41
    $region40: #{tpu_custom_call.1} parent=1 // pred_region
      %1606 = dma.done [#allocation3], 512
    $region41: #{tpu_custom_call.1} parent=1 // pred_fallthru
      _
    %1607 = vsyncpa [#allocation3], 1

</llo_original>
